<compile_context>
chip_gen: v7x
topology: tpu7x:2x2x1
jax: 0.10.0
libtpu: 0.0.40
codegen_flags: <defaults>
</compile_context>

<pallas_src>
import math

import jax
import jax.numpy as jnp
import numpy as np
from jax.experimental import pallas as pl
from jax.experimental.pallas import tpu as pltpu

ALPHA = 0.2          # LeakyReLU negative slope (the module's `alpha`)
NEG_INF = -9e15      # mask value, matches -9000000000000000.0 in the torch code


def _gat_kernel(feat_ref, adj_ref, wcat1_ref, a_aug_ref, wcat2_ref, bw2d_ref,
                out_ref):
    f32 = jnp.float32
    Bb, N, Fin = feat_ref.shape
    Fout = out_ref.shape[-1]
    E = wcat2_ref.shape[1] - Fout
    rows = Bb * N

    feat3 = feat_ref[...].astype(f32)                 # (Bb, N, Fin)
    feat2 = feat3.reshape(rows, Fin)                  # flatten batch*nodes

    # ---------- fused feat-side projection: [h | h1 | e1] in one MXU pass ----------
    proj1 = jnp.dot(feat2, wcat1_ref[...], preferred_element_type=f32)
    h = proj1[:, :Fout]                               # attention features
    h1 = proj1[:, Fout:2 * Fout]                      # feat @ W_1
    e1 = proj1[:, 2 * Fout:2 * Fout + E]              # left embedding

    # ---------- attention logits via the augmented bilinear form ----------
    # logits[n,m] = [h_n,1] @ A_aug @ [h_m,1]^T = h_n a12 h_m^T + h_n a2 + a1^T h_m
    h_aug = jnp.concatenate([h, jnp.ones((rows, 1), f32)], axis=-1)  # (rows, F+1)
    t = jnp.dot(h_aug, a_aug_ref[...], preferred_element_type=f32)   # (rows, F+1)
    t3 = t.reshape(Bb, N, Fout + 1)
    h_aug3 = h_aug.reshape(Bb, N, Fout + 1)
    logits = jnp.einsum("bnf,bmf->bnm", t3, h_aug3,
                        preferred_element_type=f32)                  # (Bb, N, N)

    # ---------- masked softmax (f32 elementwise) ----------
    e = jnp.where(logits >= 0, logits, ALPHA * logits)               # LeakyReLU
    e = jnp.where(adj_ref[...] > 0, e, jnp.float32(NEG_INF))
    e_max = jnp.max(e, axis=-1, keepdims=True)
    p = jnp.exp(e - e_max)
    attn = p * pl.reciprocal(jnp.sum(p, axis=-1, keepdims=True), approx=False)
    # TODO(synk): F.dropout on attention skipped (inference / training=False).

    # ---------- aggregate (f32 operands, f32 accumulate) ----------
    h_agg = jnp.einsum("bnm,bmf->bnf", attn, feat3,
                       preferred_element_type=f32)                   # (Bb, N, Fin)

    # ---------- fused update-side projection: [h2 | e2] in one MXU pass ----------
    h_agg2 = h_agg.reshape(rows, Fin)
    proj2 = jnp.dot(h_agg2, wcat2_ref[...], preferred_element_type=f32)
    h2 = proj2[:, :Fout]                              # h_agg @ W_2
    e2 = proj2[:, Fout:Fout + E]                      # right embedding

    # ---------- EmbedBilinear as a single K=E*E matmul on the Kronecker feature ----
    kron = jnp.concatenate([e1[:, i:i + 1] * e2 for i in range(E)], axis=-1)
    h12 = jnp.dot(kron, bw2d_ref[...], preferred_element_type=f32)

    out = h1 + h2 + h12       # activation=None for this instance
    # TODO(synk): optional self.activation hook not applied (None here).
    out_ref[...] = out.reshape(Bb, N, Fout).astype(out_ref.dtype)


def _pick_block_batch(B, N, target_rows=256):
    """Largest divisor of B with Bb*N <= ~target_rows MXU rows while keeping
    >= 2 grid steps along the batch (so both v7x TensorCores get work)."""
    cap = max(1, target_rows // max(N, 1))
    best = 1
    for bb in range(1, B + 1):
        if B % bb != 0 or bb > cap:
            continue
        if B >= 2 and B // bb < 2:
            continue
        best = bb
    return best


def order2_gat_forward(feat, adj, params, block_batch=None):
    B, N, Fin = feat.shape
    Fout = params["W"].shape[1]
    E = params["Wl_t"].shape[1]
    f32 = jnp.float32

    Bb = _pick_block_batch(B, N) if block_batch is None else block_batch
    assert B % Bb == 0, "batch must be divisible by the per-step block batch"

    # ----- fused / augmented weights, built once in the wrapper -----
    wcat1 = jnp.concatenate(
        [params["W"], params["W1"], params["Wl_t"]], axis=1).astype(f32)   # (Fin, 2F+E)
    wcat2 = jnp.concatenate(
        [params["W2"], params["Wr_t"]], axis=1).astype(f32)                # (Fin, F+E)
    a_aug = jnp.zeros((Fout + 1, Fout + 1), f32)
    a_aug = a_aug.at[:Fout, :Fout].set(params["a12"])
    a_aug = a_aug.at[:Fout, Fout].set(params["a2"][:, 0])
    a_aug = a_aug.at[Fout, :Fout].set(params["a1"][:, 0])
    bw2d = params["Bw_t"].reshape(E * E, Fout).astype(f32)                 # (E*E, F)

    def full2d(d0, d1):
        return pl.BlockSpec((d0, d1), lambda b: (0, 0))

    # NOTE: per-step VMEM here is tiny (~Bb*(N*Fin + N*N + N*Fout)*4 bytes); for
    # larger N, re-derive Bb against v7x's 64 MiB VMEM (vs 128 MiB v5e/v6e).
    return pl.pallas_call(
        _gat_kernel,
        out_shape=jax.ShapeDtypeStruct((B, N, Fout), feat.dtype),
        grid_spec=pltpu.PrefetchScalarGridSpec(
            num_scalar_prefetch=0,
            grid=(B // Bb,),
            in_specs=[
                pl.BlockSpec((Bb, N, Fin), lambda b: (b, 0, 0)),   # feat
                pl.BlockSpec((Bb, N, N), lambda b: (b, 0, 0)),     # adj
                full2d(Fin, 2 * Fout + E),      # [W | W_1 | Wl]
                full2d(Fout + 1, Fout + 1),     # augmented a12/a1/a2
                full2d(Fin, Fout + E),          # [W_2 | Wr]
                full2d(E * E, Fout),            # bilinear weight
            ],
            out_specs=pl.BlockSpec((Bb, N, Fout), lambda b: (b, 0, 0)),
        ),
        compiler_params=pltpu.CompilerParams(
            dimension_semantics=("parallel",)),
    )(feat, adj, wcat1, a_aug, wcat2, bw2d)


def _reference(feat, adj, p):
    """Pure-JAX f32 reference matching the PyTorch forward (eval, activation=None)."""
    h = feat @ p["W"]
    ax = h @ p["a1"]
    ay = h @ p["a2"]
    a_xy = (h @ p["a12"]) @ jnp.swapaxes(h, 1, 2)
    logits = jnp.swapaxes(ax, 1, 2) + ay + a_xy
    e = jnp.where(logits >= 0, logits, ALPHA * logits)
    e = jnp.where(adj > 0, e, NEG_INF)
    attn = jax.nn.softmax(e, axis=-1)
    h_agg = attn @ feat
    h1 = feat @ p["W1"]
    h2 = h_agg @ p["W2"]
    e1 = feat @ p["Wl_t"]
    e2 = h_agg @ p["Wr_t"]
    h12 = jnp.einsum("bni,ijo,bnj->bno", e1, p["Bw_t"], e2)
    return h1 + h2 + h12


def _xavier(key, shape, gain=1.414):
    limit = gain * math.sqrt(6.0 / (shape[0] + shape[1]))
    return jax.random.uniform(key, shape, jnp.float32, -limit, limit)


if __name__ == "__main__":
    B, N, Fin, Fout, E = 8, 16, 32, 32, 5

    key = jax.random.PRNGKey(0)
    ks = jax.random.split(key, 12)

    feat = jax.random.normal(ks[0], (B, N, Fin), jnp.float32)
    adj = (jax.random.uniform(ks[1], (B, N, N)) > 0.5).astype(jnp.float32)
    adj = jnp.maximum(adj, jnp.eye(N, dtype=jnp.float32)[None])  # self loops

    # Deterministic parameter init (shapes follow the module's __init__).
    # NOTE: W_xy exists in the module but is unused in forward -> not materialized.
    wl = _xavier(ks[8], (E, Fin), gain=1.0)        # nn.Linear(Fin -> E).weight
    wr = _xavier(ks[9], (E, Fin), gain=1.0)        # nn.Linear(Fin -> E).weight
    bw = jax.random.uniform(ks[10], (Fout, E, E), jnp.float32,
                            -1.0 / math.sqrt(E), 1.0 / math.sqrt(E))  # nn.Bilinear
    params = {
        "W": _xavier(ks[2], (Fin, Fout)),
        "W1": _xavier(ks[3], (Fin, Fout)),
        "W2": _xavier(ks[4], (Fin, Fout)),
        "a1": _xavier(ks[5], (Fout, 1)),
        "a2": _xavier(ks[6], (Fout, 1)),
        "a12": _xavier(ks[7], (Fout, Fout)),
        "Wl_t": jnp.transpose(wl),                       # (Fin, E)
        "Wr_t": jnp.transpose(wr),                       # (Fin, E)
        "Bw_t": jnp.transpose(bw, (1, 2, 0)),            # (E, E, Fout)
    }

    ref = _reference(feat, adj, params)

    # Batched path: Bb graphs per grid step (Bb=4 here -> 2 grid steps).
    out = jax.block_until_ready(order2_gat_forward(feat, adj, params))
    # All-f32 kernel: only accumulation-order / softmax rounding differences.
    np.testing.assert_allclose(np.asarray(out), np.asarray(ref),
                               rtol=1e-2, atol=1e-2)

    # Also exercise the Bb=1 path (tiny batch still keeps >= 2 grid steps).
    out1 = jax.block_until_ready(
        order2_gat_forward(feat[:2], adj[:2], params, block_batch=1))
    np.testing.assert_allclose(np.asarray(out1), np.asarray(ref[:2]),
                               rtol=1e-2, atol=1e-2)

    print("KERNEL_OK")
</pallas_src>

<mosaic_0001>
module attributes {stable_mosaic.version = 11 : i64} {
  func.func @_gat_kernel(%arg0: i32, %arg1: memref<4x16x32xf32, #tpu.memory_space<vmem>>, %arg2: memref<4x16x16xf32, #tpu.memory_space<vmem>>, %arg3: memref<32x69xf32, #tpu.memory_space<vmem>>, %arg4: memref<33x33xf32, #tpu.memory_space<vmem>>, %arg5: memref<32x37xf32, #tpu.memory_space<vmem>>, %arg6: memref<25x32xf32, #tpu.memory_space<vmem>>, %arg7: memref<4x16x32xf32, #tpu.memory_space<vmem>>) attributes {dimension_semantics = [#tpu.dimension_semantics<parallel>], iteration_bounds = array<i64: 2>, scalar_prefetch = 0 : i64, scratch_operands = 0 : i64, tpu.core_type = #tpu.core_type<tc>, window_params = [{transform_indices = @transform_0, window_bounds = array<i64: 4, 16, 32>}, {transform_indices = @transform_1, window_bounds = array<i64: 4, 16, 16>}, {pipeline_mode = #tpu.pipeline_mode<synchronous>, transform_indices = @transform_2, window_bounds = array<i64: 32, 69>}, {pipeline_mode = #tpu.pipeline_mode<synchronous>, transform_indices = @transform_3, window_bounds = array<i64: 33, 33>}, {pipeline_mode = #tpu.pipeline_mode<synchronous>, transform_indices = @transform_4, window_bounds = array<i64: 32, 37>}, {pipeline_mode = #tpu.pipeline_mode<synchronous>, transform_indices = @transform_5, window_bounds = array<i64: 25, 32>}, {transform_indices = @transform_6, window_bounds = array<i64: 4, 16, 32>}]} {
    %c0 = arith.constant 0 : index
    %c0_0 = arith.constant 0 : index
    %c0_1 = arith.constant 0 : index
    %0 = vector.load %arg1[%c0, %c0_0, %c0_1] : memref<4x16x32xf32, #tpu.memory_space<vmem>>, vector<4x16x32xf32>
    %1 = vector.shape_cast %0 : vector<4x16x32xf32> to vector<64x32xf32>
    %c0_2 = arith.constant 0 : index
    %c0_3 = arith.constant 0 : index
    %2 = vector.load %arg3[%c0_2, %c0_3] : memref<32x69xf32, #tpu.memory_space<vmem>>, vector<32x69xf32>
    %cst = arith.constant dense<0.000000e+00> : vector<64x69xf32>
    %3 = tpu.matmul %1, %2, %cst {dimension_numbers = #tpu.dot_dimension_numbers<[1], [0], [0], [1], [0, 0, 1, 1], [], []>} : vector<64x32xf32>, vector<32x69xf32>, vector<64x69xf32> -> vector<64x69xf32>
    %4 = vector.extract_strided_slice %3 {offsets = [0, 0], sizes = [64, 32], strides = [1, 1]} : vector<64x69xf32> to vector<64x32xf32>
    %5 = vector.extract_strided_slice %3 {offsets = [0, 32], sizes = [64, 32], strides = [1, 1]} : vector<64x69xf32> to vector<64x32xf32>
    %6 = vector.extract_strided_slice %3 {offsets = [0, 64], sizes = [64, 5], strides = [1, 1]} : vector<64x69xf32> to vector<64x5xf32>
    %cst_4 = arith.constant 1.000000e+00 : f32
    %7 = vector.broadcast %cst_4 : f32 to vector<64x1xf32>
    %8 = tpu.concatenate %4, %7 in 1 : vector<64x32xf32>, vector<64x1xf32> -> vector<64x33xf32>
    %c0_5 = arith.constant 0 : index
    %c0_6 = arith.constant 0 : index
    %9 = vector.load %arg4[%c0_5, %c0_6] : memref<33x33xf32, #tpu.memory_space<vmem>>, vector<33x33xf32>
    %cst_7 = arith.constant dense<0.000000e+00> : vector<64x33xf32>
    %10 = tpu.matmul %8, %9, %cst_7 {dimension_numbers = #tpu.dot_dimension_numbers<[1], [0], [0], [1], [0, 0, 1, 1], [], []>} : vector<64x33xf32>, vector<33x33xf32>, vector<64x33xf32> -> vector<64x33xf32>
    %11 = vector.shape_cast %10 : vector<64x33xf32> to vector<4x16x33xf32>
    %12 = vector.shape_cast %8 : vector<64x33xf32> to vector<4x16x33xf32>
    "tpu.trace_start"() <{level = 10 : i32, message = "bnf,bmf->bnm"}> : () -> ()
    %cst_8 = arith.constant dense<0.000000e+00> : vector<4x16x16xf32>
    %13 = tpu.matmul %11, %12, %cst_8 {dimension_numbers = #tpu.dot_dimension_numbers<[2], [2], [1], [1], [0, 0, 0, 1, 1, 1], [0], [0]>} : vector<4x16x33xf32>, vector<4x16x33xf32>, vector<4x16x16xf32> -> vector<4x16x16xf32>
    %cst_9 = arith.constant 0.000000e+00 : f32
    "tpu.trace_stop"() : () -> ()
    %14 = vector.broadcast %cst_9 : f32 to vector<4x16x16xf32>
    %15 = arith.cmpf oge, %13, %14 : vector<4x16x16xf32>
    %cst_10 = arith.constant 2.000000e-01 : f32
    %16 = vector.broadcast %cst_10 : f32 to vector<4x16x16xf32>
    %17 = arith.mulf %16, %13 : vector<4x16x16xf32>
    %18 = arith.select %15, %13, %17 : vector<4x16x16xi1>, vector<4x16x16xf32>
    %c0_11 = arith.constant 0 : index
    %c0_12 = arith.constant 0 : index
    %c0_13 = arith.constant 0 : index
    %19 = vector.load %arg2[%c0_11, %c0_12, %c0_13] : memref<4x16x16xf32, #tpu.memory_space<vmem>>, vector<4x16x16xf32>
    %cst_14 = arith.constant 0.000000e+00 : f32
    %20 = vector.broadcast %cst_14 : f32 to vector<4x16x16xf32>
    %21 = arith.cmpf ogt, %19, %20 : vector<4x16x16xf32>
    %cst_15 = arith.constant -9.000000e+15 : f32
    %22 = vector.broadcast %cst_15 : f32 to vector<4x16x16xf32>
    %23 = arith.select %21, %18, %22 : vector<4x16x16xi1>, vector<4x16x16xf32>
    %cst_16 = arith.constant dense<0xFF800000> : vector<4x16xf32>
    %24 = vector.multi_reduction <maximumf>, %23, %cst_16 [2] : vector<4x16x16xf32> to vector<4x16xf32>
    %25 = vector.shape_cast %24 : vector<4x16xf32> to vector<4x16x1xf32>
    %26 = vector.broadcast %25 : vector<4x16x1xf32> to vector<4x16x16xf32>
    %27 = arith.subf %23, %26 : vector<4x16x16xf32>
    %28 = math.exp %27 : vector<4x16x16xf32>
    %cst_17 = arith.constant dense<0.000000e+00> : vector<4x16xf32>
    %29 = vector.multi_reduction <add>, %28, %cst_17 [2] : vector<4x16x16xf32> to vector<4x16xf32>
    %30 = vector.shape_cast %29 : vector<4x16xf32> to vector<4x16x1xf32>
    %31 = tpu.reciprocal %30 : vector<4x16x1xf32> -> vector<4x16x1xf32>
    %32 = vector.broadcast %31 : vector<4x16x1xf32> to vector<4x16x16xf32>
    %33 = arith.mulf %28, %32 : vector<4x16x16xf32>
    "tpu.trace_start"() <{level = 10 : i32, message = "bnm,bmf->bnf"}> : () -> ()
    %cst_18 = arith.constant dense<0.000000e+00> : vector<4x16x32xf32>
    %34 = tpu.matmul %33, %0, %cst_18 {dimension_numbers = #tpu.dot_dimension_numbers<[2], [1], [1], [2], [0, 0, 0, 1, 1, 2], [0], [0]>} : vector<4x16x16xf32>, vector<4x16x32xf32>, vector<4x16x32xf32> -> vector<4x16x32xf32>
    "tpu.trace_stop"() : () -> ()
    %35 = vector.shape_cast %34 : vector<4x16x32xf32> to vector<64x32xf32>
    %c0_19 = arith.constant 0 : index
    %c0_20 = arith.constant 0 : index
    %36 = vector.load %arg5[%c0_19, %c0_20] : memref<32x37xf32, #tpu.memory_space<vmem>>, vector<32x37xf32>
    %cst_21 = arith.constant dense<0.000000e+00> : vector<64x37xf32>
    %37 = tpu.matmul %35, %36, %cst_21 {dimension_numbers = #tpu.dot_dimension_numbers<[1], [0], [0], [1], [0, 0, 1, 1], [], []>} : vector<64x32xf32>, vector<32x37xf32>, vector<64x37xf32> -> vector<64x37xf32>
    %38 = vector.extract_strided_slice %37 {offsets = [0, 0], sizes = [64, 32], strides = [1, 1]} : vector<64x37xf32> to vector<64x32xf32>
    %39 = vector.extract_strided_slice %37 {offsets = [0, 32], sizes = [64, 5], strides = [1, 1]} : vector<64x37xf32> to vector<64x5xf32>
    %40 = vector.extract_strided_slice %6 {offsets = [0, 0], sizes = [64, 1], strides = [1, 1]} : vector<64x5xf32> to vector<64x1xf32>
    %41 = vector.broadcast %40 : vector<64x1xf32> to vector<64x5xf32>
    %42 = arith.mulf %41, %39 : vector<64x5xf32>
    %43 = vector.extract_strided_slice %6 {offsets = [0, 1], sizes = [64, 1], strides = [1, 1]} : vector<64x5xf32> to vector<64x1xf32>
    %44 = vector.broadcast %43 : vector<64x1xf32> to vector<64x5xf32>
    %45 = arith.mulf %44, %39 : vector<64x5xf32>
    %46 = vector.extract_strided_slice %6 {offsets = [0, 2], sizes = [64, 1], strides = [1, 1]} : vector<64x5xf32> to vector<64x1xf32>
    %47 = vector.broadcast %46 : vector<64x1xf32> to vector<64x5xf32>
    %48 = arith.mulf %47, %39 : vector<64x5xf32>
    %49 = vector.extract_strided_slice %6 {offsets = [0, 3], sizes = [64, 1], strides = [1, 1]} : vector<64x5xf32> to vector<64x1xf32>
    %50 = vector.broadcast %49 : vector<64x1xf32> to vector<64x5xf32>
    %51 = arith.mulf %50, %39 : vector<64x5xf32>
    %52 = vector.extract_strided_slice %6 {offsets = [0, 4], sizes = [64, 1], strides = [1, 1]} : vector<64x5xf32> to vector<64x1xf32>
    %53 = vector.broadcast %52 : vector<64x1xf32> to vector<64x5xf32>
    %54 = arith.mulf %53, %39 : vector<64x5xf32>
    %55 = tpu.concatenate %42, %45, %48, %51, %54 in 1 : vector<64x5xf32>, vector<64x5xf32>, vector<64x5xf32>, vector<64x5xf32>, vector<64x5xf32> -> vector<64x25xf32>
    %c0_22 = arith.constant 0 : index
    %c0_23 = arith.constant 0 : index
    %56 = vector.load %arg6[%c0_22, %c0_23] : memref<25x32xf32, #tpu.memory_space<vmem>>, vector<25x32xf32>
    %cst_24 = arith.constant dense<0.000000e+00> : vector<64x32xf32>
    %57 = tpu.matmul %55, %56, %cst_24 {dimension_numbers = #tpu.dot_dimension_numbers<[1], [0], [0], [1], [0, 0, 1, 1], [], []>} : vector<64x25xf32>, vector<25x32xf32>, vector<64x32xf32> -> vector<64x32xf32>
    %58 = arith.addf %5, %38 : vector<64x32xf32>
    %59 = arith.addf %58, %57 : vector<64x32xf32>
    %60 = vector.shape_cast %59 : vector<64x32xf32> to vector<4x16x32xf32>
    %c0_25 = arith.constant 0 : index
    %c0_26 = arith.constant 0 : index
    %c0_27 = arith.constant 0 : index
    %61 = vector.load %arg7[%c0_25, %c0_26, %c0_27] : memref<4x16x32xf32, #tpu.memory_space<vmem>>, vector<4x16x32xf32>
    tpu.vector_store %arg7[%c0_25, %c0_26, %c0_27], %60 {strides = array<i32>} : memref<4x16x32xf32, #tpu.memory_space<vmem>>, vector<4x16x32xf32>,
    return
  }
  func.func @transform_0(%arg0: i32) -> (i32, i32, i32) {
    %c0_i32 = arith.constant 0 : i32
    %c0_i32_0 = arith.constant 0 : i32
    %c0_i32_1 = arith.constant 0 : i32
    return %arg0, %c0_i32, %c0_i32_0 : i32, i32, i32
  }
  func.func @transform_1(%arg0: i32) -> (i32, i32, i32) {
    %c0_i32 = arith.constant 0 : i32
    %c0_i32_0 = arith.constant 0 : i32
    %c0_i32_1 = arith.constant 0 : i32
    return %arg0, %c0_i32, %c0_i32_0 : i32, i32, i32
  }
  func.func @transform_2(%arg0: i32) -> (i32, i32) {
    %c0_i32 = arith.constant 0 : i32
    %c0_i32_0 = arith.constant 0 : i32
    %c0_i32_1 = arith.constant 0 : i32
    return %c0_i32, %c0_i32_0 : i32, i32
  }
  func.func @transform_3(%arg0: i32) -> (i32, i32) {
    %c0_i32 = arith.constant 0 : i32
    %c0_i32_0 = arith.constant 0 : i32
    %c0_i32_1 = arith.constant 0 : i32
    return %c0_i32, %c0_i32_0 : i32, i32
  }
  func.func @transform_4(%arg0: i32) -> (i32, i32) {
    %c0_i32 = arith.constant 0 : i32
    %c0_i32_0 = arith.constant 0 : i32
    %c0_i32_1 = arith.constant 0 : i32
    return %c0_i32, %c0_i32_0 : i32, i32
  }
  func.func @transform_5(%arg0: i32) -> (i32, i32) {
    %c0_i32 = arith.constant 0 : i32
    %c0_i32_0 = arith.constant 0 : i32
    %c0_i32_1 = arith.constant 0 : i32
    return %c0_i32, %c0_i32_0 : i32, i32
  }
  func.func @transform_6(%arg0: i32) -> (i32, i32, i32) {
    %c0_i32 = arith.constant 0 : i32
    %c0_i32_0 = arith.constant 0 : i32
    %c0_i32_1 = arith.constant 0 : i32
    return %arg0, %c0_i32, %c0_i32_0 : i32, i32, i32
  }
}

</mosaic_0001>

<llo_original>
// kernel: tpu_custom_call.1
$region0: #{tpu_custom_call.1}
  #allocation0 [shape = 'u32[]', space=smem, size = 0x4, offset = 0x4, fixed_abs, tag = 'smem constant byte address 0x4 - core index']
  #allocation1 [shape = 'u32[144,128]{1,0:T(1,128)}', space=vmem, size = 0x12000, scoped, tag = 'internal scratch']
  %s0 = inlined_call_operand.hbm [shape: f32[8,16,32], index: 0, kind: input, shape index: {}]
  %s1 = inlined_call_operand.hbm [shape: f32[8,16,16], index: 1, kind: input, shape index: {}]
  %s2 = inlined_call_operand.hbm [shape: f32[32,69], index: 2, kind: input, shape index: {}]
  %s3 = inlined_call_operand.hbm [shape: f32[33,33], index: 3, kind: input, shape index: {}]
  %s4 = inlined_call_operand.hbm [shape: f32[32,37], index: 4, kind: input, shape index: {}]
  %s5 = inlined_call_operand.hbm [shape: f32[25,32], index: 5, kind: input, shape index: {}]
  %s6 = inlined_call_operand.hbm [shape: f32[8,16,32], index: 6, kind: output, shape index: {}]
  %s7 = sld [smem:[#allocation0]]
  $region81: #{tpu_custom_call.1} parent=0
    _
  %s9 = ssub.s32 1, %s7
  %s10 = scalar_select 0, %s9, %s7
  $region1: #{tpu_custom_call.1} parent=0
    #allocation2 [shape = 'u8[65536]{0}', space=vmem, size = 0x10000, scoped, tag = 'input window, operand 0']
    #allocation3 [shape = 's32[2]{0}', space=sflag, size = 0x8, scoped, tag = 'scoped memory for tpu_custom_call.1']
    #allocation4 [shape = 's32[2]{0}', space=sflag, size = 0x8, scoped, tag = 'scoped memory for tpu_custom_call.1']
    #allocation5 [shape = 'u8[65536]{0}', space=vmem, size = 0x10000, scoped, tag = 'input window, operand 1']
    #allocation6 [shape = 's32[2]{0}', space=sflag, size = 0x8, scoped, tag = 'scoped memory for tpu_custom_call.1']
    #allocation7 [shape = 'u8[16384]{0}', space=vmem, size = 0x4000, scoped, tag = 'input window, operand 2, single buffered']
    #allocation8 [shape = 'u8[20480]{0}', space=vmem, size = 0x5000, scoped, tag = 'input window, operand 3, single buffered']
    #allocation9 [shape = 's32[1]{0}', space=sflag, size = 0x4, scoped, tag = 'scoped memory for tpu_custom_call.1']
    #allocation10 [shape = 'u8[16384]{0}', space=vmem, size = 0x4000, scoped, tag = 'input window, operand 4, single buffered']
    #allocation11 [shape = 'u8[16384]{0}', space=vmem, size = 0x4000, scoped, tag = 'input window, operand 5, single buffered']
    #allocation12 [shape = 's32[1]{0}', space=sflag, size = 0x4, scoped, tag = 'scoped memory for tpu_custom_call.1']
    #allocation13 [shape = 'u8[65536]{0}', space=vmem, size = 0x10000, scoped, tag = 'output window, operand 0']
    %11 = vsyncpa [#allocation3], 0
    %s12 = scalar_lea.sflag [#allocation3], 1
    %13 = vsyncpa %s12, 0
    %14 = vsyncpa [#allocation6], 0
    %s15 = scalar_lea.sflag [#allocation6], 1
    %16 = vsyncpa %s15, 0
    %17 = vsyncpa [#allocation9], 0
    %18 = vsyncpa [#allocation12], 0
    %19 = vsyncpa [#allocation4], 0
    %s20 = scalar_lea.sflag [#allocation4], 1
    %21 = vsyncpa %s20, 0
    loop: start=0, step=1, limit=4
    $region2: #{tpu_custom_call.1} parent=1 // loop_pre_header
      _
    $region3: #{tpu_custom_call.1} parent=1 // loop_header
      %s23 = sphi 0, %s27
      %p24 = scmp.ge.s32.totalorder %s23, 4
      %s33 = sphi 0, %s35
      %s36 = sphi 0, %s33
      %s37 = sphi 0, %s36
      %s53 = sphi 0, %s37
      %s59 = sphi 0, %s61
      %s62 = sphi 0, %s59
      %s63 = sphi 0, %s62
      %s79 = sphi 0, %s63
      %s83 = sphi 0, %s83
      %s85 = sphi 0, %s83
      %s86 = sphi 0, %s85
      %s100 = sphi 0, %s86
      %s104 = sphi 0, %s104
      %s106 = sphi 0, %s104
      %s107 = sphi 0, %s106
      %s121 = sphi 0, %s107
      %s125 = sphi 0, %s125
      %s127 = sphi 0, %s125
      %s128 = sphi 0, %s127
      %s142 = sphi 0, %s128
      %s146 = sphi 0, %s146
      %s148 = sphi 0, %s146
      %s149 = sphi 0, %s148
      %s163 = sphi 0, %s149
      %s169 = sphi 0, %s171
      %s172 = sphi 0, %s169
      %s173 = sphi 0, %s172
      %s189 = sphi 0, %s173
    $region4: #{tpu_custom_call.1} parent=1 // loop_header_branch
      %26 = sbr.rel (%p24) target = $region8
    $region5: #{tpu_custom_call.1} parent=1 // loop_body
      %s28 = ssub.s32 %s23, 1
      %s29 = ssub.s32 %s23, 2
      %s30 = sadd.s32 %s23, 1
      %s31 = ssub.s32 %s23, %s30
      %p32 = scmp.eq.s32.totalorder %s31, 0
      %s34 = sadd.s32 %s33, 1
      %s35 = scalar_select %p32, %s33, %s34
      %p38 = pneg %p32
      %p39 = scmp.eq.s32.totalorder %s23, 1
      %p40 = por %p38, %p39
      %p41 = scmp.ne.s32.totalorder %s33, %s36
      %p42 = scmp.eq.s32.totalorder %s23, 0
      %p43 = por %p41, %p42
      %p44 = scmp.ne.s32.totalorder %s33, %s36
      %p45 = scmp.eq.s32.totalorder %s28, 1
      %p46 = por %p44, %p45
      %p47 = scmp.ne.s32.totalorder %s36, %s37
      %p48 = scmp.eq.s32.totalorder %s28, 0
      %p49 = por %p47, %p48
      %p50 = scmp.ne.s32.totalorder %s36, %s37
      %p51 = scmp.eq.s32.totalorder %s29, 1
      %p52 = por %p50, %p51
      %p54 = scmp.ne.s32.totalorder %s37, %s53
      %p55 = scmp.eq.s32.totalorder %s29, 0
      %p56 = por %p54, %p55
      %s57 = ssub.s32 %s23, %s30
      %p58 = scmp.eq.s32.totalorder %s57, 0
      %s60 = sadd.s32 %s59, 1
      %s61 = scalar_select %p58, %s59, %s60
      %p64 = pneg %p58
      %p65 = scmp.eq.s32.totalorder %s23, 1
      %p66 = por %p64, %p65
      %p67 = scmp.ne.s32.totalorder %s59, %s62
      %p68 = scmp.eq.s32.totalorder %s23, 0
      %p69 = por %p67, %p68
      %p70 = scmp.ne.s32.totalorder %s59, %s62
      %p71 = scmp.eq.s32.totalorder %s28, 1
      %p72 = por %p70, %p71
      %p73 = scmp.ne.s32.totalorder %s62, %s63
      %p74 = scmp.eq.s32.totalorder %s28, 0
      %p75 = por %p73, %p74
      %p76 = scmp.ne.s32.totalorder %s62, %s63
      %p77 = scmp.eq.s32.totalorder %s29, 1
      %p78 = por %p76, %p77
      %p80 = scmp.ne.s32.totalorder %s63, %s79
      %p81 = scmp.eq.s32.totalorder %s29, 0
      %p82 = por %p80, %p81
      %s84 = sadd.s32 %s83, 1
      %p87 = scmp.eq.s32.totalorder %s23, 1
      %p88 = scmp.ne.s32.totalorder %s83, %s85
      %p89 = scmp.eq.s32.totalorder %s23, 0
      %p90 = por %p88, %p89
      %p91 = scmp.ne.s32.totalorder %s83, %s85
      %p92 = scmp.eq.s32.totalorder %s28, 1
      %p93 = por %p91, %p92
      %p94 = scmp.ne.s32.totalorder %s85, %s86
      %p95 = scmp.eq.s32.totalorder %s28, 0
      %p96 = por %p94, %p95
      %p97 = scmp.ne.s32.totalorder %s85, %s86
      %p98 = scmp.eq.s32.totalorder %s29, 1
      %p99 = por %p97, %p98
      %p101 = scmp.ne.s32.totalorder %s86, %s100
      %p102 = scmp.eq.s32.totalorder %s29, 0
      %p103 = por %p101, %p102
      %s105 = sadd.s32 %s104, 1
      %p108 = scmp.eq.s32.totalorder %s23, 1
      %p109 = scmp.ne.s32.totalorder %s104, %s106
      %p110 = scmp.eq.s32.totalorder %s23, 0
      %p111 = por %p109, %p110
      %p112 = scmp.ne.s32.totalorder %s104, %s106
      %p113 = scmp.eq.s32.totalorder %s28, 1
      %p114 = por %p112, %p113
      %p115 = scmp.ne.s32.totalorder %s106, %s107
      %p116 = scmp.eq.s32.totalorder %s28, 0
      %p117 = por %p115, %p116
      %p118 = scmp.ne.s32.totalorder %s106, %s107
      %p119 = scmp.eq.s32.totalorder %s29, 1
      %p120 = por %p118, %p119
      %p122 = scmp.ne.s32.totalorder %s107, %s121
      %p123 = scmp.eq.s32.totalorder %s29, 0
      %p124 = por %p122, %p123
      %s126 = sadd.s32 %s125, 1
      %p129 = scmp.eq.s32.totalorder %s23, 1
      %p130 = scmp.ne.s32.totalorder %s125, %s127
      %p131 = scmp.eq.s32.totalorder %s23, 0
      %p132 = por %p130, %p131
      %p133 = scmp.ne.s32.totalorder %s125, %s127
      %p134 = scmp.eq.s32.totalorder %s28, 1
      %p135 = por %p133, %p134
      %p136 = scmp.ne.s32.totalorder %s127, %s128
      %p137 = scmp.eq.s32.totalorder %s28, 0
      %p138 = por %p136, %p137
      %p139 = scmp.ne.s32.totalorder %s127, %s128
      %p140 = scmp.eq.s32.totalorder %s29, 1
      %p141 = por %p139, %p140
      %p143 = scmp.ne.s32.totalorder %s128, %s142
      %p144 = scmp.eq.s32.totalorder %s29, 0
      %p145 = por %p143, %p144
      %s147 = sadd.s32 %s146, 1
      %p150 = scmp.eq.s32.totalorder %s23, 1
      %p151 = scmp.ne.s32.totalorder %s146, %s148
      %p152 = scmp.eq.s32.totalorder %s23, 0
      %p153 = por %p151, %p152
      %p154 = scmp.ne.s32.totalorder %s146, %s148
      %p155 = scmp.eq.s32.totalorder %s28, 1
      %p156 = por %p154, %p155
      %p157 = scmp.ne.s32.totalorder %s148, %s149
      %p158 = scmp.eq.s32.totalorder %s28, 0
      %p159 = por %p157, %p158
      %p160 = scmp.ne.s32.totalorder %s148, %s149
      %p161 = scmp.eq.s32.totalorder %s29, 1
      %p162 = por %p160, %p161
      %p164 = scmp.ne.s32.totalorder %s149, %s163
      %p165 = scmp.eq.s32.totalorder %s29, 0
      %p166 = por %p164, %p165
      %s167 = ssub.s32 %s23, %s30
      %p168 = scmp.eq.s32.totalorder %s167, 0
      %s170 = sadd.s32 %s169, 1
      %s171 = scalar_select %p168, %s169, %s170
      %p174 = pneg %p168
      %p175 = scmp.eq.s32.totalorder %s23, 1
      %p176 = por %p174, %p175
      %p177 = scmp.ne.s32.totalorder %s169, %s172
      %p178 = scmp.eq.s32.totalorder %s23, 0
      %p179 = por %p177, %p178
      %p180 = scmp.ne.s32.totalorder %s169, %s172
      %p181 = scmp.eq.s32.totalorder %s28, 1
      %p182 = por %p180, %p181
      %p183 = scmp.ne.s32.totalorder %s172, %s173
      %p184 = scmp.eq.s32.totalorder %s28, 0
      %p185 = por %p183, %p184
      %p186 = scmp.ne.s32.totalorder %s172, %s173
      %p187 = scmp.eq.s32.totalorder %s29, 1
      %p188 = por %p186, %p187
      %p190 = scmp.ne.s32.totalorder %s173, %s189
      %p191 = scmp.eq.s32.totalorder %s29, 0
      %p192 = por %p190, %p191
      %p193 = scmp.le.s32.totalorder 1, %s23
      %p194 = scmp.lt.s32.totalorder %s23, 3
      %p195 = pnand %p193, %p194
      %p196 = pneg %p195
      // Predicated region
      $region9: #{tpu_custom_call.1} parent=5 // pred_check
        _
      $region10: #{tpu_custom_call.1} parent=5 // pred_check_branch
        %198 = sbr.rel (%p195) target = $region12
      $region11: #{tpu_custom_call.1} parent=5 // pred_region
        %s199 = ssub.s32 %s23, 1
        // Predicated region
        $region13: #{tpu_custom_call.1} parent=11 // pred_check
          %p200 = pneg %p96
        $region14: #{tpu_custom_call.1} parent=11 // pred_check_branch
          %202 = sbr.rel (%p200) target = $region16
        $region15: #{tpu_custom_call.1} parent=11 // pred_region
          %s204 = ssub.s32 512, 512
          %205 = vsyncadd [#allocation6], %s204
          %s206 = sshll.u32 [#allocation7], 4
          %s207 = int_to_ptr.vmem [resolvable:$true] %s206
          %212 = dma.hbm_to_vmem [thread:$0]  %s2, 512, %s207, [#allocation6], 128, 128, 8
        $region16: #{tpu_custom_call.1} parent=11 // pred_fallthru
          _
        // Predicated region
        $region17: #{tpu_custom_call.1} parent=11 // pred_check
          %p213 = pneg %p117
        $region18: #{tpu_custom_call.1} parent=11 // pred_check_branch
          %215 = sbr.rel (%p213) target = $region20
        $region19: #{tpu_custom_call.1} parent=11 // pred_region
          %s217 = ssub.s32 640, 640
          %218 = vsyncadd [#allocation9], %s217
          %s219 = sshll.u32 [#allocation8], 4
          %s220 = int_to_ptr.vmem [resolvable:$true] %s219
          %225 = dma.hbm_to_vmem [thread:$0]  %s3, 640, %s220, [#allocation9], 128, 128, 8
        $region20: #{tpu_custom_call.1} parent=11 // pred_fallthru
          _
        // Predicated region
        $region21: #{tpu_custom_call.1} parent=11 // pred_check
          %p226 = pneg %p138
        $region22: #{tpu_custom_call.1} parent=11 // pred_check_branch
          %228 = sbr.rel (%p226) target = $region24
        $region23: #{tpu_custom_call.1} parent=11 // pred_region
          %s230 = ssub.s32 512, 512
          %231 = vsyncadd [#allocation9], %s230
          %s232 = sshll.u32 [#allocation10], 4
          %s233 = int_to_ptr.vmem [resolvable:$true] %s232
          %238 = dma.hbm_to_vmem [thread:$0]  %s4, 512, %s233, [#allocation9], 128, 128, 8
        $region24: #{tpu_custom_call.1} parent=11 // pred_fallthru
          _
        // Predicated region
        $region25: #{tpu_custom_call.1} parent=11 // pred_check
          %p239 = pneg %p159
        $region26: #{tpu_custom_call.1} parent=11 // pred_check_branch
          %241 = sbr.rel (%p239) target = $region28
        $region27: #{tpu_custom_call.1} parent=11 // pred_region
          %s243 = ssub.s32 512, 512
          %244 = vsyncadd [#allocation12], %s243
          %s245 = sshll.u32 [#allocation11], 4
          %s246 = int_to_ptr.vmem [resolvable:$true] %s245
          %251 = dma.hbm_to_vmem [thread:$0]  %s5, 512, %s246, [#allocation12], 128, 128, 8
        $region28: #{tpu_custom_call.1} parent=11 // pred_fallthru
          _
      $region12: #{tpu_custom_call.1} parent=5 // pred_fallthru
        _
      %p252 = scmp.lt.s32.totalorder %s23, 2
      // Predicated region
      $region29: #{tpu_custom_call.1} parent=5 // pred_check
        %p253 = pneg %p252
      $region30: #{tpu_custom_call.1} parent=5 // pred_check_branch
        %255 = sbr.rel (%p253) target = $region32
      $region31: #{tpu_custom_call.1} parent=5 // pred_region
        // Predicated region
        $region33: #{tpu_custom_call.1} parent=31 // pred_check
          %p256 = pneg %p43
        $region34: #{tpu_custom_call.1} parent=31 // pred_check_branch
          %258 = sbr.rel (%p256) target = $region36
        $region35: #{tpu_custom_call.1} parent=31 // pred_region
          %s259 = sand.u32 %s33, 1
          %s260 = scalar_lea.sflag [#allocation3], %s259
          %s261 = sand.u32 %s33, 1
          %s262 = smul.addr %s261, 64
          %s263 = scalar_lea.vmem [#allocation2], %s262
          %s264 = smul.u32 4, %s23
          %s266 = ssub.s32 1024, 1024
          %267 = vsyncadd %s260, %s266
          %s268 = smul.addr %s264, 2
          %s269 = smul.addr %s268, 128
          %s270 = scalar_lea.hbm %s0, %s269
          %s271 = sshll.u32 %s263, 4
          %s272 = int_to_ptr.vmem [resolvable:$true] %s271
          %277 = dma.hbm_to_vmem [thread:$0]  %s270, 1024, %s272, %s260, 128, 128, 8
        $region36: #{tpu_custom_call.1} parent=31 // pred_fallthru
          _
        // Predicated region
        $region37: #{tpu_custom_call.1} parent=31 // pred_check
          %p278 = pneg %p69
        $region38: #{tpu_custom_call.1} parent=31 // pred_check_branch
          %280 = sbr.rel (%p278) target = $region40
        $region39: #{tpu_custom_call.1} parent=31 // pred_region
          %s281 = sand.u32 %s23, 1
          %s282 = scalar_lea.sflag [#allocation6], %s281
          %s283 = sand.u32 %s59, 1
          %s284 = smul.addr %s283, 64
          %s285 = scalar_lea.vmem [#allocation5], %s284
          %s286 = smul.u32 4, %s23
          %s288 = ssub.s32 1024, 1024
          %289 = vsyncadd %s282, %s288
          %s290 = smul.addr %s286, 2
          %s291 = smul.addr %s290, 128
          %s292 = scalar_lea.hbm %s1, %s291
          %s293 = sshll.u32 %s285, 4
          %s294 = int_to_ptr.vmem [resolvable:$true] %s293
          %299 = dma.hbm_to_vmem [thread:$0]  %s292, 1024, %s294, %s282, 128, 128, 8
        $region40: #{tpu_custom_call.1} parent=31 // pred_fallthru
          _
      $region32: #{tpu_custom_call.1} parent=5 // pred_fallthru
        _
      %p300 = scmp.le.s32.totalorder 1, %s23
      %p301 = scmp.lt.s32.totalorder %s23, 3
      %p302 = pnand %p300, %p301
      %p303 = pneg %p302
      // Predicated region
      $region41: #{tpu_custom_call.1} parent=5 // pred_check
        _
      $region42: #{tpu_custom_call.1} parent=5 // pred_check_branch
        %305 = sbr.rel (%p302) target = $region44
      $region43: #{tpu_custom_call.1} parent=5 // pred_region
        %s306 = ssub.s32 %s23, 1
        %s307 = sand.u32 %s36, 1
        %s308 = scalar_lea.sflag [#allocation3], %s307
        %s309 = sand.u32 %s36, 1
        %s310 = smul.addr %s309, 64
        %s311 = scalar_lea.vmem [#allocation2], %s310
        // Predicated region
        $region45: #{tpu_custom_call.1} parent=43 // pred_check
          %p312 = pneg %p49
        $region46: #{tpu_custom_call.1} parent=43 // pred_check_branch
          %314 = sbr.rel (%p312) target = $region48
        $region47: #{tpu_custom_call.1} parent=43 // pred_region
          %315 = dma.done %s308, 1024
        $region48: #{tpu_custom_call.1} parent=43 // pred_fallthru
          _
        %s316 = sand.u32 %s28, 1
        %s317 = scalar_lea.sflag [#allocation6], %s316
        %s318 = sand.u32 %s62, 1
        %s319 = smul.addr %s318, 64
        %s320 = scalar_lea.vmem [#allocation5], %s319
        // Predicated region
        $region49: #{tpu_custom_call.1} parent=43 // pred_check
          %p321 = pneg %p75
        $region50: #{tpu_custom_call.1} parent=43 // pred_check_branch
          %323 = sbr.rel (%p321) target = $region52
        $region51: #{tpu_custom_call.1} parent=43 // pred_region
          %324 = dma.done %s317, 1024
        $region52: #{tpu_custom_call.1} parent=43 // pred_fallthru
          _
        // Predicated region
        $region53: #{tpu_custom_call.1} parent=43 // pred_check
          %p325 = pneg %p96
        $region54: #{tpu_custom_call.1} parent=43 // pred_check_branch
          %327 = sbr.rel (%p325) target = $region56
        $region55: #{tpu_custom_call.1} parent=43 // pred_region
          %328 = dma.done [#allocation6], 512
        $region56: #{tpu_custom_call.1} parent=43 // pred_fallthru
          _
        // Predicated region
        $region57: #{tpu_custom_call.1} parent=43 // pred_check
          %p329 = pneg %p117
        $region58: #{tpu_custom_call.1} parent=43 // pred_check_branch
          %331 = sbr.rel (%p329) target = $region60
        $region59: #{tpu_custom_call.1} parent=43 // pred_region
          %332 = dma.done [#allocation9], 640
        $region60: #{tpu_custom_call.1} parent=43 // pred_fallthru
          _
        // Predicated region
        $region61: #{tpu_custom_call.1} parent=43 // pred_check
          %p333 = pneg %p138
        $region62: #{tpu_custom_call.1} parent=43 // pred_check_branch
          %335 = sbr.rel (%p333) target = $region64
        $region63: #{tpu_custom_call.1} parent=43 // pred_region
          %336 = dma.done [#allocation9], 512
        $region64: #{tpu_custom_call.1} parent=43 // pred_fallthru
          _
        // Predicated region
        $region65: #{tpu_custom_call.1} parent=43 // pred_check
          %p337 = pneg %p159
        $region66: #{tpu_custom_call.1} parent=43 // pred_check_branch
          %339 = sbr.rel (%p337) target = $region68
        $region67: #{tpu_custom_call.1} parent=43 // pred_region
          %340 = dma.done [#allocation12], 512
        $region68: #{tpu_custom_call.1} parent=43 // pred_fallthru
          _
        %s341 = sand.u32 %s36, 1
        %s342 = scalar_lea.sflag [#allocation3], %s341
        %s343 = sand.u32 %s36, 1
        %s344 = smul.addr %s343, 64
        %s345 = scalar_lea.vmem [#allocation2], %s344
        %p346 = pneg %p49
        %p347 = pneg %p46
        %s348 = sand.u32 %s28, 1
        %s349 = scalar_lea.sflag [#allocation6], %s348
        %s350 = sand.u32 %s62, 1
        %s351 = smul.addr %s350, 64
        %s352 = scalar_lea.vmem [#allocation5], %s351
        %p353 = pneg %p75
        %p354 = pneg %p72
        %p355 = pneg %p96
        %p356 = pneg %p93
        %p357 = pneg %p117
        %p358 = pneg %p114
        %p359 = pneg %p138
        %p360 = pneg %p135
        %p361 = pneg %p159
        %p362 = pneg %p156
        %p363 = pneg %p185
        %p364 = pneg %p182
        %s365 = sand.u32 %s172, 1
        %s366 = scalar_lea.sflag [#allocation4], %s365
        %s367 = sand.u32 %s172, 1
        %s368 = smul.addr %s367, 64
        %s369 = scalar_lea.vmem [#allocation13], %s368
        %s370 = smul.u32 4, %s28
        %s371 = smul.u32 4, %s28
        %s372 = smul.u32 4, %s28
        %v373 = vld [vmem:[%s311] sm:$0xff]
        %v374 = vld [vmem:[%s311 + $0x8] sm:$0xff]
        %v375 = vld [vmem:[%s311 + $0x10] sm:$0xff]
        %v376 = vld [vmem:[%s311 + $0x18] sm:$0xff]
        %v377 = vld [vmem:[%s311 + $0x20] sm:$0xff]
        %v378 = vld [vmem:[%s311 + $0x28] sm:$0xff]
        %v379 = vld [vmem:[%s311 + $0x30] sm:$0xff]
        %v380 = vld [vmem:[%s311 + $0x38] sm:$0xff]
        %v381 = vld [vmem:[#allocation7] sm:$0xff]
        %v382 = vld [vmem:[#allocation7 + $0x8] sm:$0xff]
        %v383 = vld [vmem:[#allocation7 + $0x10] sm:$0xff]
        %v384 = vld [vmem:[#allocation7 + $0x18] sm:$0xff]
        %vm385 = vcmask 261120
        %v387 = vsel %vm385, %v373, 0
        %v390 = vsel %vm385, %v374, 0
        %v393 = vsel %vm385, %v375, 0
        %v396 = vsel %vm385, %v376, 0
        %v399 = vsel %vm385, %v377, 0
        %v402 = vsel %vm385, %v378, 0
        %v405 = vsel %vm385, %v379, 0
        %v408 = vsel %vm385, %v380, 0
        %410 = vmatprep.subr.mxu0 0.0
        %411 = vmatpush1.msra.mxu0 %v381
        %412 = vmatprep.subr.mxu0 0.0
        %413 = vmatpush1.msra.mxu0 %v382
        %414 = vmatprep.subr.mxu0 0.0
        %415 = vmatpush1.msra.mxu0 %v383
        %416 = vmatprep.subr.mxu0 0.0
        %417 = vmatpush1.msra.mxu0 %v384
        %418 = vmatprep.subr.mxu0 0.0
        %419 = vmatpush1.msra.mxu0 0.0
        %420 = vmatprep.subr.mxu0 0.0
        %421 = vmatpush1.msra.mxu0 0.0
        %422 = vmatprep.subr.mxu0 0.0
        %423 = vmatpush1.msra.mxu0 0.0
        %424 = vmatprep.subr.mxu0 0.0
        %425 = vmatpush1.msra.mxu0 0.0
        %426 = vmatprep.subr.mxu0 0.0
        %427 = vmatpush1.msra.mxu0 0.0
        %428 = vmatprep.subr.mxu0 0.0
        %429 = vmatpush1.msra.mxu0 0.0
        %430 = vmatprep.subr.mxu0 0.0
        %431 = vmatpush1.msra.mxu0 0.0
        %432 = vmatprep.subr.mxu0 0.0
        %433 = vmatpush1.msra.mxu0 0.0
        %434 = vmatprep.subr.mxu0 0.0
        %435 = vmatpush1.msra.mxu0 0.0
        %436 = vmatprep.subr.mxu0 0.0
        %437 = vmatpush1.msra.mxu0 0.0
        %438 = vmatprep.subr.mxu0 0.0
        %439 = vmatpush1.msra.mxu0 0.0
        %440 = vmatprep.subr.mxu0 0.0
        %441 = vmatpush1.msra.mxu0 0.0
        %442 = vmatprep.subr.mxu0 0.0
        %443 = vmatpush1.msra.mxu0 0.0
        %444 = vmatprep.subr.mxu0 0.0
        %445 = vmatpush1.msra.mxu0 0.0
        %446 = vmatprep.subr.mxu0 0.0
        %447 = vmatpush1.msra.mxu0 0.0
        %448 = vmatprep.subr.mxu0 0.0
        %449 = vmatpush1.msra.mxu0 0.0
        %450 = vmatprep.subr.mxu0 0.0
        %451 = vmatpush1.msra.mxu0 0.0
        %452 = vmatprep.subr.mxu0 0.0
        %453 = vmatpush1.msra.mxu0 0.0
        %454 = vmatprep.subr.mxu0 0.0
        %455 = vmatpush1.msra.mxu0 0.0
        %456 = vmatprep.subr.mxu0 0.0
        %457 = vmatpush1.msra.mxu0 0.0
        %458 = vmatprep.subr.mxu0 0.0
        %459 = vmatpush1.msra.mxu0 0.0
        %460 = vmatprep.subr.mxu0 0.0
        %461 = vmatpush1.msra.mxu0 0.0
        %462 = vmatprep.subr.mxu0 0.0
        %463 = vmatpush1.msra.mxu0 0.0
        %464 = vmatprep.subr.mxu0 0.0
        %465 = vmatpush1.msra.mxu0 0.0
        %466 = vmatprep.subr.mxu0 0.0
        %467 = vmatpush1.msra.mxu0 0.0
        %468 = vmatprep.subr.mxu0 0.0
        %469 = vmatpush1.msra.mxu0 0.0
        %470 = vmatprep.subr.mxu0 0.0
        %471 = vmatpush1.msra.mxu0 0.0
        %472 = vmatprep.subr.mxu0 0.0
        %473 = vmatpush1.msra.mxu0 0.0
        %474 = vmatprep.mubr.f32.mxu0 0.0
        %475 = vmatmul.mubr.f32.gmra.mrb[0].mxu0 %v387
        %v476 = vpop.f32.mrb[0].mxu0
        %v477 = vadd.f32 0.0, %v476
        %v478 = vpop.f32.mrb[0].mxu0
        %479 = vmatprep.mubr.f32.mxu0 0.0
        %480 = vmatmul.mubr.f32.gmra.mrb[0].mxu0 %v390
        %v481 = vpop.f32.mrb[0].mxu0
        %v482 = vadd.f32 0.0, %v481
        %v483 = vpop.f32.mrb[0].mxu0
        %484 = vmatprep.mubr.f32.mxu0 0.0
        %485 = vmatmul.mubr.f32.gmra.mrb[0].mxu0 %v393
        %v486 = vpop.f32.mrb[0].mxu0
        %v487 = vadd.f32 0.0, %v486
        %v488 = vpop.f32.mrb[0].mxu0
        %489 = vmatprep.mubr.f32.mxu0 0.0
        %490 = vmatmul.mubr.f32.gmra.mrb[0].mxu0 %v396
        %v491 = vpop.f32.mrb[0].mxu0
        %v492 = vadd.f32 0.0, %v491
        %v493 = vpop.f32.mrb[0].mxu0
        %494 = vmatprep.mubr.f32.mxu0 0.0
        %495 = vmatmul.mubr.f32.gmra.mrb[0].mxu0 %v399
        %v496 = vpop.f32.mrb[0].mxu0
        %v497 = vadd.f32 0.0, %v496
        %v498 = vpop.f32.mrb[0].mxu0
        %499 = vmatprep.mubr.f32.mxu0 0.0
        %500 = vmatmul.mubr.f32.gmra.mrb[0].mxu0 %v402
        %v501 = vpop.f32.mrb[0].mxu0
        %v502 = vadd.f32 0.0, %v501
        %v503 = vpop.f32.mrb[0].mxu0
        %504 = vmatprep.mubr.f32.mxu0 0.0
        %505 = vmatmul.mubr.f32.gmra.mrb[0].mxu0 %v405
        %v506 = vpop.f32.mrb[0].mxu0
        %v507 = vadd.f32 0.0, %v506
        %v508 = vpop.f32.mrb[0].mxu0
        %509 = vmatprep.mubr.f32.mxu0 0.0
        %510 = vmatmul.mubr.f32.gmra.mrb[0].mxu0 %v408
        %v511 = vpop.f32.mrb[0].mxu0
        %v512 = vadd.f32 0.0, %v511
        %v513 = vpop.f32.mrb[0].mxu0
        %514 = vdwg.mxu0
        %v515 = vsel %vm385, %v477, 1.0
        %v516 = vsel %vm385, %v482, 1.0
        %v517 = vsel %vm385, %v487, 1.0
        %v518 = vsel %vm385, %v492, 1.0
        %v519 = vsel %vm385, %v497, 1.0
        %v520 = vsel %vm385, %v502, 1.0
        %v521 = vsel %vm385, %v507, 1.0
        %v522 = vsel %vm385, %v512, 1.0
        %v523 = vld [vmem:[#allocation8] sm:$0xff]
        %v524 = vld [vmem:[#allocation8 + $0x8] sm:$0xff]
        %v525 = vld [vmem:[#allocation8 + $0x10] sm:$0xff]
        %v526 = vld [vmem:[#allocation8 + $0x18] sm:$0xff]
        %v527 = vld [vmem:[#allocation8 + $0x20] sm:$0x1]
        %vm528 = vcmask 269312
        %v530 = vsel %vm528, %v515, 0
        %v533 = vsel %vm528, %v516, 0
        %v536 = vsel %vm528, %v517, 0
        %v539 = vsel %vm528, %v518, 0
        %v542 = vsel %vm528, %v519, 0
        %v545 = vsel %vm528, %v520, 0
        %v548 = vsel %vm528, %v521, 0
        %v551 = vsel %vm528, %v522, 0
        %vm553 = vcmask 1040384
        %v555 = vsel %vm553, %v527, 0
        %557 = vmatprep.subr.mxu0 0.0
        %558 = vmatpush1.msra.mxu0 %v523
        %559 = vmatprep.subr.mxu0 0.0
        %560 = vmatpush1.msra.mxu0 %v524
        %561 = vmatprep.subr.mxu0 0.0
        %562 = vmatpush1.msra.mxu0 %v525
        %563 = vmatprep.subr.mxu0 0.0
        %564 = vmatpush1.msra.mxu0 %v526
        %565 = vmatprep.subr.mxu0 0.0
        %566 = vmatpush1.msra.mxu0 %v555
        %567 = vmatprep.subr.mxu0 0.0
        %568 = vmatpush1.msra.mxu0 0.0
        %569 = vmatprep.subr.mxu0 0.0
        %570 = vmatpush1.msra.mxu0 0.0
        %571 = vmatprep.subr.mxu0 0.0
        %572 = vmatpush1.msra.mxu0 0.0
        %573 = vmatprep.subr.mxu0 0.0
        %574 = vmatpush1.msra.mxu0 0.0
        %575 = vmatprep.subr.mxu0 0.0
        %576 = vmatpush1.msra.mxu0 0.0
        %577 = vmatprep.subr.mxu0 0.0
        %578 = vmatpush1.msra.mxu0 0.0
        %579 = vmatprep.subr.mxu0 0.0
        %580 = vmatpush1.msra.mxu0 0.0
        %581 = vmatprep.subr.mxu0 0.0
        %582 = vmatpush1.msra.mxu0 0.0
        %583 = vmatprep.subr.mxu0 0.0
        %584 = vmatpush1.msra.mxu0 0.0
        %585 = vmatprep.subr.mxu0 0.0
        %586 = vmatpush1.msra.mxu0 0.0
        %587 = vmatprep.subr.mxu0 0.0
        %588 = vmatpush1.msra.mxu0 0.0
        %589 = vmatprep.subr.mxu0 0.0
        %590 = vmatpush1.msra.mxu0 0.0
        %591 = vmatprep.subr.mxu0 0.0
        %592 = vmatpush1.msra.mxu0 0.0
        %593 = vmatprep.subr.mxu0 0.0
        %594 = vmatpush1.msra.mxu0 0.0
        %595 = vmatprep.subr.mxu0 0.0
        %596 = vmatpush1.msra.mxu0 0.0
        %597 = vmatprep.subr.mxu0 0.0
        %598 = vmatpush1.msra.mxu0 0.0
        %599 = vmatprep.subr.mxu0 0.0
        %600 = vmatpush1.msra.mxu0 0.0
        %601 = vmatprep.subr.mxu0 0.0
        %602 = vmatpush1.msra.mxu0 0.0
        %603 = vmatprep.subr.mxu0 0.0
        %604 = vmatpush1.msra.mxu0 0.0
        %605 = vmatprep.subr.mxu0 0.0
        %606 = vmatpush1.msra.mxu0 0.0
        %607 = vmatprep.subr.mxu0 0.0
        %608 = vmatpush1.msra.mxu0 0.0
        %609 = vmatprep.subr.mxu0 0.0
        %610 = vmatpush1.msra.mxu0 0.0
        %611 = vmatprep.subr.mxu0 0.0
        %612 = vmatpush1.msra.mxu0 0.0
        %613 = vmatprep.subr.mxu0 0.0
        %614 = vmatpush1.msra.mxu0 0.0
        %615 = vmatprep.subr.mxu0 0.0
        %616 = vmatpush1.msra.mxu0 0.0
        %617 = vmatprep.subr.mxu0 0.0
        %618 = vmatpush1.msra.mxu0 0.0
        %619 = vmatprep.subr.mxu0 0.0
        %620 = vmatpush1.msra.mxu0 0.0
        %621 = vmatprep.mubr.f32.mxu0 0.0
        %622 = vmatmul.mubr.f32.gmra.mrb[0].mxu0 %v530
        %v623 = vpop.f32.mrb[0].mxu0
        %v624 = vadd.f32 0.0, %v623
        %v625 = vpop.f32.mrb[0].mxu0
        %626 = vmatprep.mubr.f32.mxu0 0.0
        %627 = vmatmul.mubr.f32.gmra.mrb[0].mxu0 %v533
        %v628 = vpop.f32.mrb[0].mxu0
        %v629 = vadd.f32 0.0, %v628
        %v630 = vpop.f32.mrb[0].mxu0
        %631 = vmatprep.mubr.f32.mxu0 0.0
        %632 = vmatmul.mubr.f32.gmra.mrb[0].mxu0 %v536
        %v633 = vpop.f32.mrb[0].mxu0
        %v634 = vadd.f32 0.0, %v633
        %v635 = vpop.f32.mrb[0].mxu0
        %636 = vmatprep.mubr.f32.mxu0 0.0
        %637 = vmatmul.mubr.f32.gmra.mrb[0].mxu0 %v539
        %v638 = vpop.f32.mrb[0].mxu0
        %v639 = vadd.f32 0.0, %v638
        %v640 = vpop.f32.mrb[0].mxu0
        %641 = vmatprep.mubr.f32.mxu0 0.0
        %642 = vmatmul.mubr.f32.gmra.mrb[0].mxu0 %v542
        %v643 = vpop.f32.mrb[0].mxu0
        %v644 = vadd.f32 0.0, %v643
        %v645 = vpop.f32.mrb[0].mxu0
        %646 = vmatprep.mubr.f32.mxu0 0.0
        %647 = vmatmul.mubr.f32.gmra.mrb[0].mxu0 %v545
        %v648 = vpop.f32.mrb[0].mxu0
        %v649 = vadd.f32 0.0, %v648
        %v650 = vpop.f32.mrb[0].mxu0
        %651 = vmatprep.mubr.f32.mxu0 0.0
        %652 = vmatmul.mubr.f32.gmra.mrb[0].mxu0 %v548
        %v653 = vpop.f32.mrb[0].mxu0
        %v654 = vadd.f32 0.0, %v653
        %v655 = vpop.f32.mrb[0].mxu0
        %656 = vmatprep.mubr.f32.mxu0 0.0
        %657 = vmatmul.mubr.f32.gmra.mrb[0].mxu0 %v551
        %v658 = vpop.f32.mrb[0].mxu0
        %v659 = vadd.f32 0.0, %v658
        %v660 = vpop.f32.mrb[0].mxu0
        %661 = vdwg.mxu0
        %v663 = vsel %vm528, %v624, 0
        %v666 = vsel %vm528, %v629, 0
        %668 = vmatprep.subr.mxu0 0.0
        %669 = vmatpush1.xpose.msra.mxu0 %v530
        %670 = vmatprep.subr.mxu0 0.0
        %671 = vmatpush1.xpose.msra.mxu0 %v533
        %672 = vmatprep.subr.mxu0 0.0
        %673 = vmatpush1.xpose.msra.mxu0 0.0
        %674 = vmatprep.subr.mxu0 0.0
        %675 = vmatpush1.xpose.msra.mxu0 0.0
        %676 = vmatprep.subr.mxu0 0.0
        %677 = vmatpush1.xpose.msra.mxu0 0.0
        %678 = vmatprep.subr.mxu0 0.0
        %679 = vmatpush1.xpose.msra.mxu0 0.0
        %680 = vmatprep.subr.mxu0 0.0
        %681 = vmatpush1.xpose.msra.mxu0 0.0
        %682 = vmatprep.subr.mxu0 0.0
        %683 = vmatpush1.xpose.msra.mxu0 0.0
        %684 = vmatprep.subr.mxu0 0.0
        %685 = vmatpush1.xpose.msra.mxu0 0.0
        %686 = vmatprep.subr.mxu0 0.0
        %687 = vmatpush1.xpose.msra.mxu0 0.0
        %688 = vmatprep.subr.mxu0 0.0
        %689 = vmatpush1.xpose.msra.mxu0 0.0
        %690 = vmatprep.subr.mxu0 0.0
        %691 = vmatpush1.xpose.msra.mxu0 0.0
        %692 = vmatprep.subr.mxu0 0.0
        %693 = vmatpush1.xpose.msra.mxu0 0.0
        %694 = vmatprep.subr.mxu0 0.0
        %695 = vmatpush1.xpose.msra.mxu0 0.0
        %696 = vmatprep.subr.mxu0 0.0
        %697 = vmatpush1.xpose.msra.mxu0 0.0
        %698 = vmatprep.subr.mxu0 0.0
        %699 = vmatpush1.xpose.msra.mxu0 0.0
        %700 = vmatprep.subr.mxu0 0.0
        %701 = vmatpush1.xpose.msra.mxu0 0.0
        %702 = vmatprep.subr.mxu0 0.0
        %703 = vmatpush1.xpose.msra.mxu0 0.0
        %704 = vmatprep.subr.mxu0 0.0
        %705 = vmatpush1.xpose.msra.mxu0 0.0
        %706 = vmatprep.subr.mxu0 0.0
        %707 = vmatpush1.xpose.msra.mxu0 0.0
        %708 = vmatprep.subr.mxu0 0.0
        %709 = vmatpush1.xpose.msra.mxu0 0.0
        %710 = vmatprep.subr.mxu0 0.0
        %711 = vmatpush1.xpose.msra.mxu0 0.0
        %712 = vmatprep.subr.mxu0 0.0
        %713 = vmatpush1.xpose.msra.mxu0 0.0
        %714 = vmatprep.subr.mxu0 0.0
        %715 = vmatpush1.xpose.msra.mxu0 0.0
        %716 = vmatprep.subr.mxu0 0.0
        %717 = vmatpush1.xpose.msra.mxu0 0.0
        %718 = vmatprep.subr.mxu0 0.0
        %719 = vmatpush1.xpose.msra.mxu0 0.0
        %720 = vmatprep.subr.mxu0 0.0
        %721 = vmatpush1.xpose.msra.mxu0 0.0
        %722 = vmatprep.subr.mxu0 0.0
        %723 = vmatpush1.xpose.msra.mxu0 0.0
        %724 = vmatprep.subr.mxu0 0.0
        %725 = vmatpush1.xpose.msra.mxu0 0.0
        %726 = vmatprep.subr.mxu0 0.0
        %727 = vmatpush1.xpose.msra.mxu0 0.0
        %728 = vmatprep.subr.mxu0 0.0
        %729 = vmatpush1.xpose.msra.mxu0 0.0
        %730 = vmatprep.subr.mxu0 0.0
        %731 = vmatpush1.xpose.msra.mxu0 0.0
        %732 = vmatprep.mubr.f32.mxu0 0.0
        %733 = vmatmul.mubr.f32.gmra.mrb[0].mxu0 %v663
        %v734 = vpop.f32.mrb[0].mxu0
        %v735 = vadd.f32 0.0, %v734
        %v736 = vpop.f32.mrb[0].mxu0
        %737 = vmatprep.mubr.f32.mxu0 0.0
        %738 = vmatmul.mubr.f32.gmra.mrb[0].mxu0 %v666
        %v739 = vpop.f32.mrb[0].mxu0
        %v740 = vadd.f32 0.0, %v739
        %v741 = vpop.f32.mrb[0].mxu0
        %742 = vdwg.mxu0
        %v744 = vsel %vm528, %v634, 0
        %v747 = vsel %vm528, %v639, 0
        %749 = vmatprep.subr.mxu0 0.0
        %750 = vmatpush1.xpose.msra.mxu0 %v536
        %751 = vmatprep.subr.mxu0 0.0
        %752 = vmatpush1.xpose.msra.mxu0 %v539
        %753 = vmatprep.subr.mxu0 0.0
        %754 = vmatpush1.xpose.msra.mxu0 0.0
        %755 = vmatprep.subr.mxu0 0.0
        %756 = vmatpush1.xpose.msra.mxu0 0.0
        %757 = vmatprep.subr.mxu0 0.0
        %758 = vmatpush1.xpose.msra.mxu0 0.0
        %759 = vmatprep.subr.mxu0 0.0
        %760 = vmatpush1.xpose.msra.mxu0 0.0
        %761 = vmatprep.subr.mxu0 0.0
        %762 = vmatpush1.xpose.msra.mxu0 0.0
        %763 = vmatprep.subr.mxu0 0.0
        %764 = vmatpush1.xpose.msra.mxu0 0.0
        %765 = vmatprep.subr.mxu0 0.0
        %766 = vmatpush1.xpose.msra.mxu0 0.0
        %767 = vmatprep.subr.mxu0 0.0
        %768 = vmatpush1.xpose.msra.mxu0 0.0
        %769 = vmatprep.subr.mxu0 0.0
        %770 = vmatpush1.xpose.msra.mxu0 0.0
        %771 = vmatprep.subr.mxu0 0.0
        %772 = vmatpush1.xpose.msra.mxu0 0.0
        %773 = vmatprep.subr.mxu0 0.0
        %774 = vmatpush1.xpose.msra.mxu0 0.0
        %775 = vmatprep.subr.mxu0 0.0
        %776 = vmatpush1.xpose.msra.mxu0 0.0
        %777 = vmatprep.subr.mxu0 0.0
        %778 = vmatpush1.xpose.msra.mxu0 0.0
        %779 = vmatprep.subr.mxu0 0.0
        %780 = vmatpush1.xpose.msra.mxu0 0.0
        %781 = vmatprep.subr.mxu0 0.0
        %782 = vmatpush1.xpose.msra.mxu0 0.0
        %783 = vmatprep.subr.mxu0 0.0
        %784 = vmatpush1.xpose.msra.mxu0 0.0
        %785 = vmatprep.subr.mxu0 0.0
        %786 = vmatpush1.xpose.msra.mxu0 0.0
        %787 = vmatprep.subr.mxu0 0.0
        %788 = vmatpush1.xpose.msra.mxu0 0.0
        %789 = vmatprep.subr.mxu0 0.0
        %790 = vmatpush1.xpose.msra.mxu0 0.0
        %791 = vmatprep.subr.mxu0 0.0
        %792 = vmatpush1.xpose.msra.mxu0 0.0
        %793 = vmatprep.subr.mxu0 0.0
        %794 = vmatpush1.xpose.msra.mxu0 0.0
        %795 = vmatprep.subr.mxu0 0.0
        %796 = vmatpush1.xpose.msra.mxu0 0.0
        %797 = vmatprep.subr.mxu0 0.0
        %798 = vmatpush1.xpose.msra.mxu0 0.0
        %799 = vmatprep.subr.mxu0 0.0
        %800 = vmatpush1.xpose.msra.mxu0 0.0
        %801 = vmatprep.subr.mxu0 0.0
        %802 = vmatpush1.xpose.msra.mxu0 0.0
        %803 = vmatprep.subr.mxu0 0.0
        %804 = vmatpush1.xpose.msra.mxu0 0.0
        %805 = vmatprep.subr.mxu0 0.0
        %806 = vmatpush1.xpose.msra.mxu0 0.0
        %807 = vmatprep.subr.mxu0 0.0
        %808 = vmatpush1.xpose.msra.mxu0 0.0
        %809 = vmatprep.subr.mxu0 0.0
        %810 = vmatpush1.xpose.msra.mxu0 0.0
        %811 = vmatprep.subr.mxu0 0.0
        %812 = vmatpush1.xpose.msra.mxu0 0.0
        %813 = vmatprep.mubr.f32.mxu0 0.0
        %814 = vmatmul.mubr.f32.gmra.mrb[0].mxu0 %v744
        %v815 = vpop.f32.mrb[0].mxu0
        %v816 = vadd.f32 0.0, %v815
        %v817 = vpop.f32.mrb[0].mxu0
        %818 = vmatprep.mubr.f32.mxu0 0.0
        %819 = vmatmul.mubr.f32.gmra.mrb[0].mxu0 %v747
        %v820 = vpop.f32.mrb[0].mxu0
        %v821 = vadd.f32 0.0, %v820
        %v822 = vpop.f32.mrb[0].mxu0
        %823 = vdwg.mxu0
        %v825 = vsel %vm528, %v644, 0
        %v828 = vsel %vm528, %v649, 0
        %830 = vmatprep.subr.mxu0 0.0
        %831 = vmatpush1.xpose.msra.mxu0 %v542
        %832 = vmatprep.subr.mxu0 0.0
        %833 = vmatpush1.xpose.msra.mxu0 %v545
        %834 = vmatprep.subr.mxu0 0.0
        %835 = vmatpush1.xpose.msra.mxu0 0.0
        %836 = vmatprep.subr.mxu0 0.0
        %837 = vmatpush1.xpose.msra.mxu0 0.0
        %838 = vmatprep.subr.mxu0 0.0
        %839 = vmatpush1.xpose.msra.mxu0 0.0
        %840 = vmatprep.subr.mxu0 0.0
        %841 = vmatpush1.xpose.msra.mxu0 0.0
        %842 = vmatprep.subr.mxu0 0.0
        %843 = vmatpush1.xpose.msra.mxu0 0.0
        %844 = vmatprep.subr.mxu0 0.0
        %845 = vmatpush1.xpose.msra.mxu0 0.0
        %846 = vmatprep.subr.mxu0 0.0
        %847 = vmatpush1.xpose.msra.mxu0 0.0
        %848 = vmatprep.subr.mxu0 0.0
        %849 = vmatpush1.xpose.msra.mxu0 0.0
        %850 = vmatprep.subr.mxu0 0.0
        %851 = vmatpush1.xpose.msra.mxu0 0.0
        %852 = vmatprep.subr.mxu0 0.0
        %853 = vmatpush1.xpose.msra.mxu0 0.0
        %854 = vmatprep.subr.mxu0 0.0
        %855 = vmatpush1.xpose.msra.mxu0 0.0
        %856 = vmatprep.subr.mxu0 0.0
        %857 = vmatpush1.xpose.msra.mxu0 0.0
        %858 = vmatprep.subr.mxu0 0.0
        %859 = vmatpush1.xpose.msra.mxu0 0.0
        %860 = vmatprep.subr.mxu0 0.0
        %861 = vmatpush1.xpose.msra.mxu0 0.0
        %862 = vmatprep.subr.mxu0 0.0
        %863 = vmatpush1.xpose.msra.mxu0 0.0
        %864 = vmatprep.subr.mxu0 0.0
        %865 = vmatpush1.xpose.msra.mxu0 0.0
        %866 = vmatprep.subr.mxu0 0.0
        %867 = vmatpush1.xpose.msra.mxu0 0.0
        %868 = vmatprep.subr.mxu0 0.0
        %869 = vmatpush1.xpose.msra.mxu0 0.0
        %870 = vmatprep.subr.mxu0 0.0
        %871 = vmatpush1.xpose.msra.mxu0 0.0
        %872 = vmatprep.subr.mxu0 0.0
        %873 = vmatpush1.xpose.msra.mxu0 0.0
        %874 = vmatprep.subr.mxu0 0.0
        %875 = vmatpush1.xpose.msra.mxu0 0.0
        %876 = vmatprep.subr.mxu0 0.0
        %877 = vmatpush1.xpose.msra.mxu0 0.0
        %878 = vmatprep.subr.mxu0 0.0
        %879 = vmatpush1.xpose.msra.mxu0 0.0
        %880 = vmatprep.subr.mxu0 0.0
        %881 = vmatpush1.xpose.msra.mxu0 0.0
        %882 = vmatprep.subr.mxu0 0.0
        %883 = vmatpush1.xpose.msra.mxu0 0.0
        %884 = vmatprep.subr.mxu0 0.0
        %885 = vmatpush1.xpose.msra.mxu0 0.0
        %886 = vmatprep.subr.mxu0 0.0
        %887 = vmatpush1.xpose.msra.mxu0 0.0
        %888 = vmatprep.subr.mxu0 0.0
        %889 = vmatpush1.xpose.msra.mxu0 0.0
        %890 = vmatprep.subr.mxu0 0.0
        %891 = vmatpush1.xpose.msra.mxu0 0.0
        %892 = vmatprep.subr.mxu0 0.0
        %893 = vmatpush1.xpose.msra.mxu0 0.0
        %894 = vmatprep.mubr.f32.mxu0 0.0
        %895 = vmatmul.mubr.f32.gmra.mrb[0].mxu0 %v825
        %v896 = vpop.f32.mrb[0].mxu0
        %v897 = vadd.f32 0.0, %v896
        %v898 = vpop.f32.mrb[0].mxu0
        %899 = vmatprep.mubr.f32.mxu0 0.0
        %900 = vmatmul.mubr.f32.gmra.mrb[0].mxu0 %v828
        %v901 = vpop.f32.mrb[0].mxu0
        %v902 = vadd.f32 0.0, %v901
        %v903 = vpop.f32.mrb[0].mxu0
        %904 = vdwg.mxu0
        %v906 = vsel %vm528, %v654, 0
        %v909 = vsel %vm528, %v659, 0
        %911 = vmatprep.subr.mxu0 0.0
        %912 = vmatpush1.xpose.msra.mxu0 %v548
        %913 = vmatprep.subr.mxu0 0.0
        %914 = vmatpush1.xpose.msra.mxu0 %v551
        %915 = vmatprep.subr.mxu0 0.0
        %916 = vmatpush1.xpose.msra.mxu0 0.0
        %917 = vmatprep.subr.mxu0 0.0
        %918 = vmatpush1.xpose.msra.mxu0 0.0
        %919 = vmatprep.subr.mxu0 0.0
        %920 = vmatpush1.xpose.msra.mxu0 0.0
        %921 = vmatprep.subr.mxu0 0.0
        %922 = vmatpush1.xpose.msra.mxu0 0.0
        %923 = vmatprep.subr.mxu0 0.0
        %924 = vmatpush1.xpose.msra.mxu0 0.0
        %925 = vmatprep.subr.mxu0 0.0
        %926 = vmatpush1.xpose.msra.mxu0 0.0
        %927 = vmatprep.subr.mxu0 0.0
        %928 = vmatpush1.xpose.msra.mxu0 0.0
        %929 = vmatprep.subr.mxu0 0.0
        %930 = vmatpush1.xpose.msra.mxu0 0.0
        %931 = vmatprep.subr.mxu0 0.0
        %932 = vmatpush1.xpose.msra.mxu0 0.0
        %933 = vmatprep.subr.mxu0 0.0
        %934 = vmatpush1.xpose.msra.mxu0 0.0
        %935 = vmatprep.subr.mxu0 0.0
        %936 = vmatpush1.xpose.msra.mxu0 0.0
        %937 = vmatprep.subr.mxu0 0.0
        %938 = vmatpush1.xpose.msra.mxu0 0.0
        %939 = vmatprep.subr.mxu0 0.0
        %940 = vmatpush1.xpose.msra.mxu0 0.0
        %941 = vmatprep.subr.mxu0 0.0
        %942 = vmatpush1.xpose.msra.mxu0 0.0
        %943 = vmatprep.subr.mxu0 0.0
        %944 = vmatpush1.xpose.msra.mxu0 0.0
        %945 = vmatprep.subr.mxu0 0.0
        %946 = vmatpush1.xpose.msra.mxu0 0.0
        %947 = vmatprep.subr.mxu0 0.0
        %948 = vmatpush1.xpose.msra.mxu0 0.0
        %949 = vmatprep.subr.mxu0 0.0
        %950 = vmatpush1.xpose.msra.mxu0 0.0
        %951 = vmatprep.subr.mxu0 0.0
        %952 = vmatpush1.xpose.msra.mxu0 0.0
        %953 = vmatprep.subr.mxu0 0.0
        %954 = vmatpush1.xpose.msra.mxu0 0.0
        %955 = vmatprep.subr.mxu0 0.0
        %956 = vmatpush1.xpose.msra.mxu0 0.0
        %957 = vmatprep.subr.mxu0 0.0
        %958 = vmatpush1.xpose.msra.mxu0 0.0
        %959 = vmatprep.subr.mxu0 0.0
        %960 = vmatpush1.xpose.msra.mxu0 0.0
        %961 = vmatprep.subr.mxu0 0.0
        %962 = vmatpush1.xpose.msra.mxu0 0.0
        %963 = vmatprep.subr.mxu0 0.0
        %964 = vmatpush1.xpose.msra.mxu0 0.0
        %965 = vmatprep.subr.mxu0 0.0
        %966 = vmatpush1.xpose.msra.mxu0 0.0
        %967 = vmatprep.subr.mxu0 0.0
        %968 = vmatpush1.xpose.msra.mxu0 0.0
        %969 = vmatprep.subr.mxu0 0.0
        %970 = vmatpush1.xpose.msra.mxu0 0.0
        %971 = vmatprep.subr.mxu0 0.0
        %972 = vmatpush1.xpose.msra.mxu0 0.0
        %973 = vmatprep.subr.mxu0 0.0
        %974 = vmatpush1.xpose.msra.mxu0 0.0
        %975 = vmatprep.mubr.f32.mxu0 0.0
        %976 = vmatmul.mubr.f32.gmra.mrb[0].mxu0 %v906
        %v977 = vpop.f32.mrb[0].mxu0
        %v978 = vadd.f32 0.0, %v977
        %v979 = vpop.f32.mrb[0].mxu0
        %980 = vmatprep.mubr.f32.mxu0 0.0
        %981 = vmatmul.mubr.f32.gmra.mrb[0].mxu0 %v909
        %v982 = vpop.f32.mrb[0].mxu0
        %v983 = vadd.f32 0.0, %v982
        %v984 = vpop.f32.mrb[0].mxu0
        %985 = vdwg.mxu0
        %vm986 = vcmp.ge.f32.partialorder %v735, 0.0
        %vm987 = vcmp.ge.f32.partialorder %v740, 0.0
        %vm988 = vcmp.ge.f32.partialorder %v816, 0.0
        %vm989 = vcmp.ge.f32.partialorder %v821, 0.0
        %vm990 = vcmp.ge.f32.partialorder %v897, 0.0
        %vm991 = vcmp.ge.f32.partialorder %v902, 0.0
        %vm992 = vcmp.ge.f32.partialorder %v978, 0.0
        %vm993 = vcmp.ge.f32.partialorder %v983, 0.0
        %v994 = vmul.f32 %v735, 0.2
        %v995 = vmul.f32 %v740, 0.2
        %v996 = vmul.f32 %v816, 0.2
        %v997 = vmul.f32 %v821, 0.2
        %v998 = vmul.f32 %v897, 0.2
        %v999 = vmul.f32 %v902, 0.2
        %v1000 = vmul.f32 %v978, 0.2
        %v1001 = vmul.f32 %v983, 0.2
        %v1002 = vsel %vm986, %v735, %v994
        %v1003 = vsel %vm987, %v740, %v995
        %v1004 = vsel %vm988, %v816, %v996
        %v1005 = vsel %vm989, %v821, %v997
        %v1006 = vsel %vm990, %v897, %v998
        %v1007 = vsel %vm991, %v902, %v999
        %v1008 = vsel %vm992, %v978, %v1000
        %v1009 = vsel %vm993, %v983, %v1001
        %v1010 = vld [vmem:[%s320] sm:$0xff]
        %v1011 = vld [vmem:[%s320 + $0x8] sm:$0xff]
        %v1012 = vld [vmem:[%s320 + $0x10] sm:$0xff]
        %v1013 = vld [vmem:[%s320 + $0x18] sm:$0xff]
        %v1014 = vld [vmem:[%s320 + $0x20] sm:$0xff]
        %v1015 = vld [vmem:[%s320 + $0x28] sm:$0xff]
        %v1016 = vld [vmem:[%s320 + $0x30] sm:$0xff]
        %v1017 = vld [vmem:[%s320 + $0x38] sm:$0xff]
        %vm1018 = vcmp.gt.f32.partialorder %v1010, 0.0
        %vm1019 = vcmp.gt.f32.partialorder %v1011, 0.0
        %vm1020 = vcmp.gt.f32.partialorder %v1012, 0.0
        %vm1021 = vcmp.gt.f32.partialorder %v1013, 0.0
        %vm1022 = vcmp.gt.f32.partialorder %v1014, 0.0
        %vm1023 = vcmp.gt.f32.partialorder %v1015, 0.0
        %vm1024 = vcmp.gt.f32.partialorder %v1016, 0.0
        %vm1025 = vcmp.gt.f32.partialorder %v1017, 0.0
        %v1026 = vsel %vm1018, %v1002, -9e+15
        %v1027 = vsel %vm1019, %v1003, -9e+15
        %v1028 = vsel %vm1020, %v1004, -9e+15
        %v1029 = vsel %vm1021, %v1005, -9e+15
        %v1030 = vsel %vm1022, %v1006, -9e+15
        %v1031 = vsel %vm1023, %v1007, -9e+15
        %v1032 = vsel %vm1024, %v1008, -9e+15
        %v1033 = vsel %vm1025, %v1009, -9e+15
        %vm1034 = vcmask 130048
        %v1035 = vsel %vm1034, %v1026, -inf
        %1036 = vmax.xlane.f32.xlu0 %v1035
        %v1037 = vpop.xlane.xlu0 %1036
        %v1038 = vsel %vm1034, %v1027, -inf
        %1039 = vmax.xlane.f32.xlu0 %v1038
        %v1040 = vpop.xlane.xlu0 %1039
        %v1041 = vsel %vm1034, %v1028, -inf
        %1042 = vmax.xlane.f32.xlu0 %v1041
        %v1043 = vpop.xlane.xlu0 %1042
        %v1044 = vsel %vm1034, %v1029, -inf
        %1045 = vmax.xlane.f32.xlu0 %v1044
        %v1046 = vpop.xlane.xlu0 %1045
        %v1047 = vsel %vm1034, %v1030, -inf
        %1048 = vmax.xlane.f32.xlu0 %v1047
        %v1049 = vpop.xlane.xlu0 %1048
        %v1050 = vsel %vm1034, %v1031, -inf
        %1051 = vmax.xlane.f32.xlu0 %v1050
        %v1052 = vpop.xlane.xlu0 %1051
        %v1053 = vsel %vm1034, %v1032, -inf
        %1054 = vmax.xlane.f32.xlu0 %v1053
        %v1055 = vpop.xlane.xlu0 %1054
        %v1056 = vsel %vm1034, %v1033, -inf
        %1057 = vmax.xlane.f32.xlu0 %v1056
        %v1058 = vpop.xlane.xlu0 %1057
        %v1059 = vsub.f32 %v1026, %v1037
        %v1060 = vsub.f32 %v1027, %v1040
        %v1061 = vsub.f32 %v1028, %v1043
        %v1062 = vsub.f32 %v1029, %v1046
        %v1063 = vsub.f32 %v1030, %v1049
        %v1064 = vsub.f32 %v1031, %v1052
        %v1065 = vsub.f32 %v1032, %v1055
        %v1066 = vsub.f32 %v1033, %v1058
        %v1067 = vmul.f32 %v1059, 1.442695
        %v1068 = vpow.pop %v1067
        %v1069 = vmul.f32 %v1060, 1.442695
        %v1070 = vpow.pop %v1069
        %v1071 = vmul.f32 %v1061, 1.442695
        %v1072 = vpow.pop %v1071
        %v1073 = vmul.f32 %v1062, 1.442695
        %v1074 = vpow.pop %v1073
        %v1075 = vmul.f32 %v1063, 1.442695
        %v1076 = vpow.pop %v1075
        %v1077 = vmul.f32 %v1064, 1.442695
        %v1078 = vpow.pop %v1077
        %v1079 = vmul.f32 %v1065, 1.442695
        %v1080 = vpow.pop %v1079
        %v1081 = vmul.f32 %v1066, 1.442695
        %v1082 = vpow.pop %v1081
        %v1083 = vsel %vm1034, %v1068, 0.0
        %1084 = vadd.xlane.f32.xlu0 %v1083
        %v1085 = vpop.xlane.xlu0 %1084
        %v1086 = vsel %vm1034, %v1070, 0.0
        %1087 = vadd.xlane.f32.xlu0 %v1086
        %v1088 = vpop.xlane.xlu0 %1087
        %v1089 = vsel %vm1034, %v1072, 0.0
        %1090 = vadd.xlane.f32.xlu0 %v1089
        %v1091 = vpop.xlane.xlu0 %1090
        %v1092 = vsel %vm1034, %v1074, 0.0
        %1093 = vadd.xlane.f32.xlu0 %v1092
        %v1094 = vpop.xlane.xlu0 %1093
        %v1095 = vsel %vm1034, %v1076, 0.0
        %1096 = vadd.xlane.f32.xlu0 %v1095
        %v1097 = vpop.xlane.xlu0 %1096
        %v1098 = vsel %vm1034, %v1078, 0.0
        %1099 = vadd.xlane.f32.xlu0 %v1098
        %v1100 = vpop.xlane.xlu0 %1099
        %v1101 = vsel %vm1034, %v1080, 0.0
        %1102 = vadd.xlane.f32.xlu0 %v1101
        %v1103 = vpop.xlane.xlu0 %1102
        %v1104 = vsel %vm1034, %v1082, 0.0
        %1105 = vadd.xlane.f32.xlu0 %v1104
        %v1106 = vpop.xlane.xlu0 %1105
        %v1107 = vrcp.pop %v1085
        %v1108 = vrcp.pop %v1088
        %v1109 = vrcp.pop %v1091
        %v1110 = vrcp.pop %v1094
        %v1111 = vrcp.pop %v1097
        %v1112 = vrcp.pop %v1100
        %v1113 = vrcp.pop %v1103
        %v1114 = vrcp.pop %v1106
        %v1115 = vmul.f32 %v1068, %v1107
        %v1116 = vmul.f32 %v1070, %v1108
        %v1117 = vmul.f32 %v1072, %v1109
        %v1118 = vmul.f32 %v1074, %v1110
        %v1119 = vmul.f32 %v1076, %v1111
        %v1120 = vmul.f32 %v1078, %v1112
        %v1121 = vmul.f32 %v1080, %v1113
        %v1122 = vmul.f32 %v1082, %v1114
        %v1124 = vsel %vm1034, %v1115, 0
        %v1127 = vsel %vm1034, %v1116, 0
        %1129 = vmatprep.subr.mxu0 0.0
        %1130 = vmatpush1.msra.mxu0 %v373
        %1131 = vmatprep.subr.mxu0 0.0
        %1132 = vmatpush1.msra.mxu0 %v374
        %1133 = vmatprep.subr.mxu0 0.0
        %1134 = vmatpush1.msra.mxu0 0.0
        %1135 = vmatprep.subr.mxu0 0.0
        %1136 = vmatpush1.msra.mxu0 0.0
        %1137 = vmatprep.subr.mxu0 0.0
        %1138 = vmatpush1.msra.mxu0 0.0
        %1139 = vmatprep.subr.mxu0 0.0
        %1140 = vmatpush1.msra.mxu0 0.0
        %1141 = vmatprep.subr.mxu0 0.0
        %1142 = vmatpush1.msra.mxu0 0.0
        %1143 = vmatprep.subr.mxu0 0.0
        %1144 = vmatpush1.msra.mxu0 0.0
        %1145 = vmatprep.subr.mxu0 0.0
        %1146 = vmatpush1.msra.mxu0 0.0
        %1147 = vmatprep.subr.mxu0 0.0
        %1148 = vmatpush1.msra.mxu0 0.0
        %1149 = vmatprep.subr.mxu0 0.0
        %1150 = vmatpush1.msra.mxu0 0.0
        %1151 = vmatprep.subr.mxu0 0.0
        %1152 = vmatpush1.msra.mxu0 0.0
        %1153 = vmatprep.subr.mxu0 0.0
        %1154 = vmatpush1.msra.mxu0 0.0
        %1155 = vmatprep.subr.mxu0 0.0
        %1156 = vmatpush1.msra.mxu0 0.0
        %1157 = vmatprep.subr.mxu0 0.0
        %1158 = vmatpush1.msra.mxu0 0.0
        %1159 = vmatprep.subr.mxu0 0.0
        %1160 = vmatpush1.msra.mxu0 0.0
        %1161 = vmatprep.subr.mxu0 0.0
        %1162 = vmatpush1.msra.mxu0 0.0
        %1163 = vmatprep.subr.mxu0 0.0
        %1164 = vmatpush1.msra.mxu0 0.0
        %1165 = vmatprep.subr.mxu0 0.0
        %1166 = vmatpush1.msra.mxu0 0.0
        %1167 = vmatprep.subr.mxu0 0.0
        %1168 = vmatpush1.msra.mxu0 0.0
        %1169 = vmatprep.subr.mxu0 0.0
        %1170 = vmatpush1.msra.mxu0 0.0
        %1171 = vmatprep.subr.mxu0 0.0
        %1172 = vmatpush1.msra.mxu0 0.0
        %1173 = vmatprep.subr.mxu0 0.0
        %1174 = vmatpush1.msra.mxu0 0.0
        %1175 = vmatprep.subr.mxu0 0.0
        %1176 = vmatpush1.msra.mxu0 0.0
        %1177 = vmatprep.subr.mxu0 0.0
        %1178 = vmatpush1.msra.mxu0 0.0
        %1179 = vmatprep.subr.mxu0 0.0
        %1180 = vmatpush1.msra.mxu0 0.0
        %1181 = vmatprep.subr.mxu0 0.0
        %1182 = vmatpush1.msra.mxu0 0.0
        %1183 = vmatprep.subr.mxu0 0.0
        %1184 = vmatpush1.msra.mxu0 0.0
        %1185 = vmatprep.subr.mxu0 0.0
        %1186 = vmatpush1.msra.mxu0 0.0
        %1187 = vmatprep.subr.mxu0 0.0
        %1188 = vmatpush1.msra.mxu0 0.0
        %1189 = vmatprep.subr.mxu0 0.0
        %1190 = vmatpush1.msra.mxu0 0.0
        %1191 = vmatprep.subr.mxu0 0.0
        %1192 = vmatpush1.msra.mxu0 0.0
        %1193 = vmatprep.mubr.f32.mxu0 0.0
        %1194 = vmatmul.mubr.f32.gmra.mrb[0].mxu0 %v1124
        %v1195 = vpop.f32.mrb[0].mxu0
        %v1196 = vadd.f32 0.0, %v1195
        %v1197 = vpop.f32.mrb[0].mxu0
        %1198 = vmatprep.mubr.f32.mxu0 0.0
        %1199 = vmatmul.mubr.f32.gmra.mrb[0].mxu0 %v1127
        %v1200 = vpop.f32.mrb[0].mxu0
        %v1201 = vadd.f32 0.0, %v1200
        %v1202 = vpop.f32.mrb[0].mxu0
        %1203 = vdwg.mxu0
        %v1205 = vsel %vm1034, %v1117, 0
        %v1208 = vsel %vm1034, %v1118, 0
        %1210 = vmatprep.subr.mxu0 0.0
        %1211 = vmatpush1.msra.mxu0 %v375
        %1212 = vmatprep.subr.mxu0 0.0
        %1213 = vmatpush1.msra.mxu0 %v376
        %1214 = vmatprep.subr.mxu0 0.0
        %1215 = vmatpush1.msra.mxu0 0.0
        %1216 = vmatprep.subr.mxu0 0.0
        %1217 = vmatpush1.msra.mxu0 0.0
        %1218 = vmatprep.subr.mxu0 0.0
        %1219 = vmatpush1.msra.mxu0 0.0
        %1220 = vmatprep.subr.mxu0 0.0
        %1221 = vmatpush1.msra.mxu0 0.0
        %1222 = vmatprep.subr.mxu0 0.0
        %1223 = vmatpush1.msra.mxu0 0.0
        %1224 = vmatprep.subr.mxu0 0.0
        %1225 = vmatpush1.msra.mxu0 0.0
        %1226 = vmatprep.subr.mxu0 0.0
        %1227 = vmatpush1.msra.mxu0 0.0
        %1228 = vmatprep.subr.mxu0 0.0
        %1229 = vmatpush1.msra.mxu0 0.0
        %1230 = vmatprep.subr.mxu0 0.0
        %1231 = vmatpush1.msra.mxu0 0.0
        %1232 = vmatprep.subr.mxu0 0.0
        %1233 = vmatpush1.msra.mxu0 0.0
        %1234 = vmatprep.subr.mxu0 0.0
        %1235 = vmatpush1.msra.mxu0 0.0
        %1236 = vmatprep.subr.mxu0 0.0
        %1237 = vmatpush1.msra.mxu0 0.0
        %1238 = vmatprep.subr.mxu0 0.0
        %1239 = vmatpush1.msra.mxu0 0.0
        %1240 = vmatprep.subr.mxu0 0.0
        %1241 = vmatpush1.msra.mxu0 0.0
        %1242 = vmatprep.subr.mxu0 0.0
        %1243 = vmatpush1.msra.mxu0 0.0
        %1244 = vmatprep.subr.mxu0 0.0
        %1245 = vmatpush1.msra.mxu0 0.0
        %1246 = vmatprep.subr.mxu0 0.0
        %1247 = vmatpush1.msra.mxu0 0.0
        %1248 = vmatprep.subr.mxu0 0.0
        %1249 = vmatpush1.msra.mxu0 0.0
        %1250 = vmatprep.subr.mxu0 0.0
        %1251 = vmatpush1.msra.mxu0 0.0
        %1252 = vmatprep.subr.mxu0 0.0
        %1253 = vmatpush1.msra.mxu0 0.0
        %1254 = vmatprep.subr.mxu0 0.0
        %1255 = vmatpush1.msra.mxu0 0.0
        %1256 = vmatprep.subr.mxu0 0.0
        %1257 = vmatpush1.msra.mxu0 0.0
        %1258 = vmatprep.subr.mxu0 0.0
        %1259 = vmatpush1.msra.mxu0 0.0
        %1260 = vmatprep.subr.mxu0 0.0
        %1261 = vmatpush1.msra.mxu0 0.0
        %1262 = vmatprep.subr.mxu0 0.0
        %1263 = vmatpush1.msra.mxu0 0.0
        %1264 = vmatprep.subr.mxu0 0.0
        %1265 = vmatpush1.msra.mxu0 0.0
        %1266 = vmatprep.subr.mxu0 0.0
        %1267 = vmatpush1.msra.mxu0 0.0
        %1268 = vmatprep.subr.mxu0 0.0
        %1269 = vmatpush1.msra.mxu0 0.0
        %1270 = vmatprep.subr.mxu0 0.0
        %1271 = vmatpush1.msra.mxu0 0.0
        %1272 = vmatprep.subr.mxu0 0.0
        %1273 = vmatpush1.msra.mxu0 0.0
        %1274 = vmatprep.mubr.f32.mxu0 0.0
        %1275 = vmatmul.mubr.f32.gmra.mrb[0].mxu0 %v1205
        %v1276 = vpop.f32.mrb[0].mxu0
        %v1277 = vadd.f32 0.0, %v1276
        %v1278 = vpop.f32.mrb[0].mxu0
        %1279 = vmatprep.mubr.f32.mxu0 0.0
        %1280 = vmatmul.mubr.f32.gmra.mrb[0].mxu0 %v1208
        %v1281 = vpop.f32.mrb[0].mxu0
        %v1282 = vadd.f32 0.0, %v1281
        %v1283 = vpop.f32.mrb[0].mxu0
        %1284 = vdwg.mxu0
        %v1286 = vsel %vm1034, %v1119, 0
        %v1289 = vsel %vm1034, %v1120, 0
        %1291 = vmatprep.subr.mxu0 0.0
        %1292 = vmatpush1.msra.mxu0 %v377
        %1293 = vmatprep.subr.mxu0 0.0
        %1294 = vmatpush1.msra.mxu0 %v378
        %1295 = vmatprep.subr.mxu0 0.0
        %1296 = vmatpush1.msra.mxu0 0.0
        %1297 = vmatprep.subr.mxu0 0.0
        %1298 = vmatpush1.msra.mxu0 0.0
        %1299 = vmatprep.subr.mxu0 0.0
        %1300 = vmatpush1.msra.mxu0 0.0
        %1301 = vmatprep.subr.mxu0 0.0
        %1302 = vmatpush1.msra.mxu0 0.0
        %1303 = vmatprep.subr.mxu0 0.0
        %1304 = vmatpush1.msra.mxu0 0.0
        %1305 = vmatprep.subr.mxu0 0.0
        %1306 = vmatpush1.msra.mxu0 0.0
        %1307 = vmatprep.subr.mxu0 0.0
        %1308 = vmatpush1.msra.mxu0 0.0
        %1309 = vmatprep.subr.mxu0 0.0
        %1310 = vmatpush1.msra.mxu0 0.0
        %1311 = vmatprep.subr.mxu0 0.0
        %1312 = vmatpush1.msra.mxu0 0.0
        %1313 = vmatprep.subr.mxu0 0.0
        %1314 = vmatpush1.msra.mxu0 0.0
        %1315 = vmatprep.subr.mxu0 0.0
        %1316 = vmatpush1.msra.mxu0 0.0
        %1317 = vmatprep.subr.mxu0 0.0
        %1318 = vmatpush1.msra.mxu0 0.0
        %1319 = vmatprep.subr.mxu0 0.0
        %1320 = vmatpush1.msra.mxu0 0.0
        %1321 = vmatprep.subr.mxu0 0.0
        %1322 = vmatpush1.msra.mxu0 0.0
        %1323 = vmatprep.subr.mxu0 0.0
        %1324 = vmatpush1.msra.mxu0 0.0
        %1325 = vmatprep.subr.mxu0 0.0
        %1326 = vmatpush1.msra.mxu0 0.0
        %1327 = vmatprep.subr.mxu0 0.0
        %1328 = vmatpush1.msra.mxu0 0.0
        %1329 = vmatprep.subr.mxu0 0.0
        %1330 = vmatpush1.msra.mxu0 0.0
        %1331 = vmatprep.subr.mxu0 0.0
        %1332 = vmatpush1.msra.mxu0 0.0
        %1333 = vmatprep.subr.mxu0 0.0
        %1334 = vmatpush1.msra.mxu0 0.0
        %1335 = vmatprep.subr.mxu0 0.0
        %1336 = vmatpush1.msra.mxu0 0.0
        %1337 = vmatprep.subr.mxu0 0.0
        %1338 = vmatpush1.msra.mxu0 0.0
        %1339 = vmatprep.subr.mxu0 0.0
        %1340 = vmatpush1.msra.mxu0 0.0
        %1341 = vmatprep.subr.mxu0 0.0
        %1342 = vmatpush1.msra.mxu0 0.0
        %1343 = vmatprep.subr.mxu0 0.0
        %1344 = vmatpush1.msra.mxu0 0.0
        %1345 = vmatprep.subr.mxu0 0.0
        %1346 = vmatpush1.msra.mxu0 0.0
        %1347 = vmatprep.subr.mxu0 0.0
        %1348 = vmatpush1.msra.mxu0 0.0
        %1349 = vmatprep.subr.mxu0 0.0
        %1350 = vmatpush1.msra.mxu0 0.0
        %1351 = vmatprep.subr.mxu0 0.0
        %1352 = vmatpush1.msra.mxu0 0.0
        %1353 = vmatprep.subr.mxu0 0.0
        %1354 = vmatpush1.msra.mxu0 0.0
        %1355 = vmatprep.mubr.f32.mxu0 0.0
        %1356 = vmatmul.mubr.f32.gmra.mrb[0].mxu0 %v1286
        %v1357 = vpop.f32.mrb[0].mxu0
        %v1358 = vadd.f32 0.0, %v1357
        %v1359 = vpop.f32.mrb[0].mxu0
        %1360 = vmatprep.mubr.f32.mxu0 0.0
        %1361 = vmatmul.mubr.f32.gmra.mrb[0].mxu0 %v1289
        %v1362 = vpop.f32.mrb[0].mxu0
        %v1363 = vadd.f32 0.0, %v1362
        %v1364 = vpop.f32.mrb[0].mxu0
        %1365 = vdwg.mxu0
        %v1367 = vsel %vm1034, %v1121, 0
        %v1370 = vsel %vm1034, %v1122, 0
        %1372 = vmatprep.subr.mxu0 0.0
        %1373 = vmatpush1.msra.mxu0 %v379
        %1374 = vmatprep.subr.mxu0 0.0
        %1375 = vmatpush1.msra.mxu0 %v380
        %1376 = vmatprep.subr.mxu0 0.0
        %1377 = vmatpush1.msra.mxu0 0.0
        %1378 = vmatprep.subr.mxu0 0.0
        %1379 = vmatpush1.msra.mxu0 0.0
        %1380 = vmatprep.subr.mxu0 0.0
        %1381 = vmatpush1.msra.mxu0 0.0
        %1382 = vmatprep.subr.mxu0 0.0
        %1383 = vmatpush1.msra.mxu0 0.0
        %1384 = vmatprep.subr.mxu0 0.0
        %1385 = vmatpush1.msra.mxu0 0.0
        %1386 = vmatprep.subr.mxu0 0.0
        %1387 = vmatpush1.msra.mxu0 0.0
        %1388 = vmatprep.subr.mxu0 0.0
        %1389 = vmatpush1.msra.mxu0 0.0
        %1390 = vmatprep.subr.mxu0 0.0
        %1391 = vmatpush1.msra.mxu0 0.0
        %1392 = vmatprep.subr.mxu0 0.0
        %1393 = vmatpush1.msra.mxu0 0.0
        %1394 = vmatprep.subr.mxu0 0.0
        %1395 = vmatpush1.msra.mxu0 0.0
        %1396 = vmatprep.subr.mxu0 0.0
        %1397 = vmatpush1.msra.mxu0 0.0
        %1398 = vmatprep.subr.mxu0 0.0
        %1399 = vmatpush1.msra.mxu0 0.0
        %1400 = vmatprep.subr.mxu0 0.0
        %1401 = vmatpush1.msra.mxu0 0.0
        %1402 = vmatprep.subr.mxu0 0.0
        %1403 = vmatpush1.msra.mxu0 0.0
        %1404 = vmatprep.subr.mxu0 0.0
        %1405 = vmatpush1.msra.mxu0 0.0
        %1406 = vmatprep.subr.mxu0 0.0
        %1407 = vmatpush1.msra.mxu0 0.0
        %1408 = vmatprep.subr.mxu0 0.0
        %1409 = vmatpush1.msra.mxu0 0.0
        %1410 = vmatprep.subr.mxu0 0.0
        %1411 = vmatpush1.msra.mxu0 0.0
        %1412 = vmatprep.subr.mxu0 0.0
        %1413 = vmatpush1.msra.mxu0 0.0
        %1414 = vmatprep.subr.mxu0 0.0
        %1415 = vmatpush1.msra.mxu0 0.0
        %1416 = vmatprep.subr.mxu0 0.0
        %1417 = vmatpush1.msra.mxu0 0.0
        %1418 = vmatprep.subr.mxu0 0.0
        %1419 = vmatpush1.msra.mxu0 0.0
        %1420 = vmatprep.subr.mxu0 0.0
        %1421 = vmatpush1.msra.mxu0 0.0
        %1422 = vmatprep.subr.mxu0 0.0
        %1423 = vmatpush1.msra.mxu0 0.0
        %1424 = vmatprep.subr.mxu0 0.0
        %1425 = vmatpush1.msra.mxu0 0.0
        %1426 = vmatprep.subr.mxu0 0.0
        %1427 = vmatpush1.msra.mxu0 0.0
        %1428 = vmatprep.subr.mxu0 0.0
        %1429 = vmatpush1.msra.mxu0 0.0
        %1430 = vmatprep.subr.mxu0 0.0
        %1431 = vmatpush1.msra.mxu0 0.0
        %1432 = vmatprep.subr.mxu0 0.0
        %1433 = vmatpush1.msra.mxu0 0.0
        %1434 = vmatprep.subr.mxu0 0.0
        %1435 = vmatpush1.msra.mxu0 0.0
        %1436 = vmatprep.mubr.f32.mxu0 0.0
        %1437 = vmatmul.mubr.f32.gmra.mrb[0].mxu0 %v1367
        %v1438 = vpop.f32.mrb[0].mxu0
        %v1439 = vadd.f32 0.0, %v1438
        %v1440 = vpop.f32.mrb[0].mxu0
        %1441 = vmatprep.mubr.f32.mxu0 0.0
        %1442 = vmatmul.mubr.f32.gmra.mrb[0].mxu0 %v1370
        %v1443 = vpop.f32.mrb[0].mxu0
        %v1444 = vadd.f32 0.0, %v1443
        %v1445 = vpop.f32.mrb[0].mxu0
        %1446 = vdwg.mxu0
        %v1447 = vld [vmem:[#allocation10] sm:$0xff]
        %v1448 = vld [vmem:[#allocation10 + $0x8] sm:$0xff]
        %v1449 = vld [vmem:[#allocation10 + $0x10] sm:$0xff]
        %v1450 = vld [vmem:[#allocation10 + $0x18] sm:$0xff]
        %v1452 = vsel %vm385, %v1196, 0
        %v1455 = vsel %vm385, %v1201, 0
        %v1458 = vsel %vm385, %v1277, 0
        %v1461 = vsel %vm385, %v1282, 0
        %v1464 = vsel %vm385, %v1358, 0
        %v1467 = vsel %vm385, %v1363, 0
        %v1470 = vsel %vm385, %v1439, 0
        %v1473 = vsel %vm385, %v1444, 0
        %1475 = vmatprep.subr.mxu0 0.0
        %1476 = vmatpush1.msra.mxu0 %v1447
        %1477 = vmatprep.subr.mxu0 0.0
        %1478 = vmatpush1.msra.mxu0 %v1448
        %1479 = vmatprep.subr.mxu0 0.0
        %1480 = vmatpush1.msra.mxu0 %v1449
        %1481 = vmatprep.subr.mxu0 0.0
        %1482 = vmatpush1.msra.mxu0 %v1450
        %1483 = vmatprep.subr.mxu0 0.0
        %1484 = vmatpush1.msra.mxu0 0.0
        %1485 = vmatprep.subr.mxu0 0.0
        %1486 = vmatpush1.msra.mxu0 0.0
        %1487 = vmatprep.subr.mxu0 0.0
        %1488 = vmatpush1.msra.mxu0 0.0
        %1489 = vmatprep.subr.mxu0 0.0
        %1490 = vmatpush1.msra.mxu0 0.0
        %1491 = vmatprep.subr.mxu0 0.0
        %1492 = vmatpush1.msra.mxu0 0.0
        %1493 = vmatprep.subr.mxu0 0.0
        %1494 = vmatpush1.msra.mxu0 0.0
        %1495 = vmatprep.subr.mxu0 0.0
        %1496 = vmatpush1.msra.mxu0 0.0
        %1497 = vmatprep.subr.mxu0 0.0
        %1498 = vmatpush1.msra.mxu0 0.0
        %1499 = vmatprep.subr.mxu0 0.0
        %1500 = vmatpush1.msra.mxu0 0.0
        %1501 = vmatprep.subr.mxu0 0.0
        %1502 = vmatpush1.msra.mxu0 0.0
        %1503 = vmatprep.subr.mxu0 0.0
        %1504 = vmatpush1.msra.mxu0 0.0
        %1505 = vmatprep.subr.mxu0 0.0
        %1506 = vmatpush1.msra.mxu0 0.0
        %1507 = vmatprep.subr.mxu0 0.0
        %1508 = vmatpush1.msra.mxu0 0.0
        %1509 = vmatprep.subr.mxu0 0.0
        %1510 = vmatpush1.msra.mxu0 0.0
        %1511 = vmatprep.subr.mxu0 0.0
        %1512 = vmatpush1.msra.mxu0 0.0
        %1513 = vmatprep.subr.mxu0 0.0
        %1514 = vmatpush1.msra.mxu0 0.0
        %1515 = vmatprep.subr.mxu0 0.0
        %1516 = vmatpush1.msra.mxu0 0.0
        %1517 = vmatprep.subr.mxu0 0.0
        %1518 = vmatpush1.msra.mxu0 0.0
        %1519 = vmatprep.subr.mxu0 0.0
        %1520 = vmatpush1.msra.mxu0 0.0
        %1521 = vmatprep.subr.mxu0 0.0
        %1522 = vmatpush1.msra.mxu0 0.0
        %1523 = vmatprep.subr.mxu0 0.0
        %1524 = vmatpush1.msra.mxu0 0.0
        %1525 = vmatprep.subr.mxu0 0.0
        %1526 = vmatpush1.msra.mxu0 0.0
        %1527 = vmatprep.subr.mxu0 0.0
        %1528 = vmatpush1.msra.mxu0 0.0
        %1529 = vmatprep.subr.mxu0 0.0
        %1530 = vmatpush1.msra.mxu0 0.0
        %1531 = vmatprep.subr.mxu0 0.0
        %1532 = vmatpush1.msra.mxu0 0.0
        %1533 = vmatprep.subr.mxu0 0.0
        %1534 = vmatpush1.msra.mxu0 0.0
        %1535 = vmatprep.subr.mxu0 0.0
        %1536 = vmatpush1.msra.mxu0 0.0
        %1537 = vmatprep.subr.mxu0 0.0
        %1538 = vmatpush1.msra.mxu0 0.0
        %1539 = vmatprep.mubr.f32.mxu0 0.0
        %1540 = vmatmul.mubr.f32.gmra.mrb[0].mxu0 %v1452
        %v1541 = vpop.f32.mrb[0].mxu0
        %v1542 = vadd.f32 0.0, %v1541
        %v1543 = vpop.f32.mrb[0].mxu0
        %1544 = vmatprep.mubr.f32.mxu0 0.0
        %1545 = vmatmul.mubr.f32.gmra.mrb[0].mxu0 %v1455
        %v1546 = vpop.f32.mrb[0].mxu0
        %v1547 = vadd.f32 0.0, %v1546
        %v1548 = vpop.f32.mrb[0].mxu0
        %1549 = vmatprep.mubr.f32.mxu0 0.0
        %1550 = vmatmul.mubr.f32.gmra.mrb[0].mxu0 %v1458
        %v1551 = vpop.f32.mrb[0].mxu0
        %v1552 = vadd.f32 0.0, %v1551
        %v1553 = vpop.f32.mrb[0].mxu0
        %1554 = vmatprep.mubr.f32.mxu0 0.0
        %1555 = vmatmul.mubr.f32.gmra.mrb[0].mxu0 %v1461
        %v1556 = vpop.f32.mrb[0].mxu0
        %v1557 = vadd.f32 0.0, %v1556
        %v1558 = vpop.f32.mrb[0].mxu0
        %1559 = vmatprep.mubr.f32.mxu0 0.0
        %1560 = vmatmul.mubr.f32.gmra.mrb[0].mxu0 %v1464
        %v1561 = vpop.f32.mrb[0].mxu0
        %v1562 = vadd.f32 0.0, %v1561
        %v1563 = vpop.f32.mrb[0].mxu0
        %1564 = vmatprep.mubr.f32.mxu0 0.0
        %1565 = vmatmul.mubr.f32.gmra.mrb[0].mxu0 %v1467
        %v1566 = vpop.f32.mrb[0].mxu0
        %v1567 = vadd.f32 0.0, %v1566
        %v1568 = vpop.f32.mrb[0].mxu0
        %1569 = vmatprep.mubr.f32.mxu0 0.0
        %1570 = vmatmul.mubr.f32.gmra.mrb[0].mxu0 %v1470
        %v1571 = vpop.f32.mrb[0].mxu0
        %v1572 = vadd.f32 0.0, %v1571
        %v1573 = vpop.f32.mrb[0].mxu0
        %1574 = vmatprep.mubr.f32.mxu0 0.0
        %1575 = vmatmul.mubr.f32.gmra.mrb[0].mxu0 %v1473
        %v1576 = vpop.f32.mrb[0].mxu0
        %v1577 = vadd.f32 0.0, %v1576
        %v1578 = vpop.f32.mrb[0].mxu0
        %1579 = vdwg.mxu0
        %1581 = vset.pattern.permute.xlu0 64
        %1582 = vperm.xlu0 %1581, %v477
        %v1583 = vpop.permute.xlu0 %1582
        %1586 = vset.pattern.permute.xlu0 64
        %1587 = vperm.xlu0 %1586, %v482
        %v1588 = vpop.permute.xlu0 %1587
        %1591 = vset.pattern.permute.xlu0 64
        %1592 = vperm.xlu0 %1591, %v487
        %v1593 = vpop.permute.xlu0 %1592
        %1596 = vset.pattern.permute.xlu0 64
        %1597 = vperm.xlu0 %1596, %v492
        %v1598 = vpop.permute.xlu0 %1597
        %1601 = vset.pattern.permute.xlu0 64
        %1602 = vperm.xlu0 %1601, %v497
        %v1603 = vpop.permute.xlu0 %1602
        %1606 = vset.pattern.permute.xlu0 64
        %1607 = vperm.xlu0 %1606, %v502
        %v1608 = vpop.permute.xlu0 %1607
        %1611 = vset.pattern.permute.xlu0 64
        %1612 = vperm.xlu0 %1611, %v507
        %v1613 = vpop.permute.xlu0 %1612
        %1616 = vset.pattern.permute.xlu0 64
        %1617 = vperm.xlu0 %1616, %v512
        %v1618 = vpop.permute.xlu0 %1617
        %v1620 = vmul.f32 %v1583, %v1542
        %v1621 = vmul.f32 %v1588, %v1547
        %v1622 = vmul.f32 %v1593, %v1552
        %v1623 = vmul.f32 %v1598, %v1557
        %v1624 = vmul.f32 %v1603, %v1562
        %v1625 = vmul.f32 %v1608, %v1567
        %v1626 = vmul.f32 %v1613, %v1572
        %v1627 = vmul.f32 %v1618, %v1577
        %1628 = vset.pattern.permute.xlu0 65
        %1629 = vperm.xlu0 %1628, %v477
        %v1630 = vpop.permute.xlu0 %1629
        %1632 = vset.pattern.permute.xlu0 65
        %1633 = vperm.xlu0 %1632, %v482
        %v1634 = vpop.permute.xlu0 %1633
        %1636 = vset.pattern.permute.xlu0 65
        %1637 = vperm.xlu0 %1636, %v487
        %v1638 = vpop.permute.xlu0 %1637
        %1640 = vset.pattern.permute.xlu0 65
        %1641 = vperm.xlu0 %1640, %v492
        %v1642 = vpop.permute.xlu0 %1641
        %1644 = vset.pattern.permute.xlu0 65
        %1645 = vperm.xlu0 %1644, %v497
        %v1646 = vpop.permute.xlu0 %1645
        %1648 = vset.pattern.permute.xlu0 65
        %1649 = vperm.xlu0 %1648, %v502
        %v1650 = vpop.permute.xlu0 %1649
        %1652 = vset.pattern.permute.xlu0 65
        %1653 = vperm.xlu0 %1652, %v507
        %v1654 = vpop.permute.xlu0 %1653
        %1656 = vset.pattern.permute.xlu0 65
        %1657 = vperm.xlu0 %1656, %v512
        %v1658 = vpop.permute.xlu0 %1657
        %v1660 = vmul.f32 %v1630, %v1542
        %v1661 = vmul.f32 %v1634, %v1547
        %v1662 = vmul.f32 %v1638, %v1552
        %v1663 = vmul.f32 %v1642, %v1557
        %v1664 = vmul.f32 %v1646, %v1562
        %v1665 = vmul.f32 %v1650, %v1567
        %v1666 = vmul.f32 %v1654, %v1572
        %v1667 = vmul.f32 %v1658, %v1577
        %1668 = vset.pattern.permute.xlu0 66
        %1669 = vperm.xlu0 %1668, %v477
        %v1670 = vpop.permute.xlu0 %1669
        %1672 = vset.pattern.permute.xlu0 66
        %1673 = vperm.xlu0 %1672, %v482
        %v1674 = vpop.permute.xlu0 %1673
        %1676 = vset.pattern.permute.xlu0 66
        %1677 = vperm.xlu0 %1676, %v487
        %v1678 = vpop.permute.xlu0 %1677
        %1680 = vset.pattern.permute.xlu0 66
        %1681 = vperm.xlu0 %1680, %v492
        %v1682 = vpop.permute.xlu0 %1681
        %1684 = vset.pattern.permute.xlu0 66
        %1685 = vperm.xlu0 %1684, %v497
        %v1686 = vpop.permute.xlu0 %1685
        %1688 = vset.pattern.permute.xlu0 66
        %1689 = vperm.xlu0 %1688, %v502
        %v1690 = vpop.permute.xlu0 %1689
        %1692 = vset.pattern.permute.xlu0 66
        %1693 = vperm.xlu0 %1692, %v507
        %v1694 = vpop.permute.xlu0 %1693
        %1696 = vset.pattern.permute.xlu0 66
        %1697 = vperm.xlu0 %1696, %v512
        %v1698 = vpop.permute.xlu0 %1697
        %v1700 = vmul.f32 %v1670, %v1542
        %v1701 = vmul.f32 %v1674, %v1547
        %v1702 = vmul.f32 %v1678, %v1552
        %v1703 = vmul.f32 %v1682, %v1557
        %v1704 = vmul.f32 %v1686, %v1562
        %v1705 = vmul.f32 %v1690, %v1567
        %v1706 = vmul.f32 %v1694, %v1572
        %v1707 = vmul.f32 %v1698, %v1577
        %1708 = vset.pattern.permute.xlu0 67
        %1709 = vperm.xlu0 %1708, %v477
        %v1710 = vpop.permute.xlu0 %1709
        %1712 = vset.pattern.permute.xlu0 67
        %1713 = vperm.xlu0 %1712, %v482
        %v1714 = vpop.permute.xlu0 %1713
        %1716 = vset.pattern.permute.xlu0 67
        %1717 = vperm.xlu0 %1716, %v487
        %v1718 = vpop.permute.xlu0 %1717
        %1720 = vset.pattern.permute.xlu0 67
        %1721 = vperm.xlu0 %1720, %v492
        %v1722 = vpop.permute.xlu0 %1721
        %1724 = vset.pattern.permute.xlu0 67
        %1725 = vperm.xlu0 %1724, %v497
        %v1726 = vpop.permute.xlu0 %1725
        %1728 = vset.pattern.permute.xlu0 67
        %1729 = vperm.xlu0 %1728, %v502
        %v1730 = vpop.permute.xlu0 %1729
        %1732 = vset.pattern.permute.xlu0 67
        %1733 = vperm.xlu0 %1732, %v507
        %v1734 = vpop.permute.xlu0 %1733
        %1736 = vset.pattern.permute.xlu0 67
        %1737 = vperm.xlu0 %1736, %v512
        %v1738 = vpop.permute.xlu0 %1737
        %v1740 = vmul.f32 %v1710, %v1542
        %v1741 = vmul.f32 %v1714, %v1547
        %v1742 = vmul.f32 %v1718, %v1552
        %v1743 = vmul.f32 %v1722, %v1557
        %v1744 = vmul.f32 %v1726, %v1562
        %v1745 = vmul.f32 %v1730, %v1567
        %v1746 = vmul.f32 %v1734, %v1572
        %v1747 = vmul.f32 %v1738, %v1577
        %1748 = vset.pattern.permute.xlu0 68
        %1749 = vperm.xlu0 %1748, %v477
        %v1750 = vpop.permute.xlu0 %1749
        %1752 = vset.pattern.permute.xlu0 68
        %1753 = vperm.xlu0 %1752, %v482
        %v1754 = vpop.permute.xlu0 %1753
        %1756 = vset.pattern.permute.xlu0 68
        %1757 = vperm.xlu0 %1756, %v487
        %v1758 = vpop.permute.xlu0 %1757
        %1760 = vset.pattern.permute.xlu0 68
        %1761 = vperm.xlu0 %1760, %v492
        %v1762 = vpop.permute.xlu0 %1761
        %1764 = vset.pattern.permute.xlu0 68
        %1765 = vperm.xlu0 %1764, %v497
        %v1766 = vpop.permute.xlu0 %1765
        %1768 = vset.pattern.permute.xlu0 68
        %1769 = vperm.xlu0 %1768, %v502
        %v1770 = vpop.permute.xlu0 %1769
        %1772 = vset.pattern.permute.xlu0 68
        %1773 = vperm.xlu0 %1772, %v507
        %v1774 = vpop.permute.xlu0 %1773
        %1776 = vset.pattern.permute.xlu0 68
        %1777 = vperm.xlu0 %1776, %v512
        %v1778 = vpop.permute.xlu0 %1777
        %v1780 = vmul.f32 %v1750, %v1542
        %v1781 = vmul.f32 %v1754, %v1547
        %v1782 = vmul.f32 %v1758, %v1552
        %v1783 = vmul.f32 %v1762, %v1557
        %v1784 = vmul.f32 %v1766, %v1562
        %v1785 = vmul.f32 %v1770, %v1567
        %v1786 = vmul.f32 %v1774, %v1572
        %v1787 = vmul.f32 %v1778, %v1577
        %1796 = vrot.lane.b32.xlu0 %v1620, 96
        %v1797 = vpop.permute.xlu0 %1796
        %1798 = vrot.lane.b32.xlu0 %v1621, 96
        %v1799 = vpop.permute.xlu0 %1798
        %1800 = vrot.lane.b32.xlu0 %v1622, 96
        %v1801 = vpop.permute.xlu0 %1800
        %1802 = vrot.lane.b32.xlu0 %v1623, 96
        %v1803 = vpop.permute.xlu0 %1802
        %1804 = vrot.lane.b32.xlu0 %v1624, 96
        %v1805 = vpop.permute.xlu0 %1804
        %1806 = vrot.lane.b32.xlu0 %v1625, 96
        %v1807 = vpop.permute.xlu0 %1806
        %1808 = vrot.lane.b32.xlu0 %v1626, 96
        %v1809 = vpop.permute.xlu0 %1808
        %1810 = vrot.lane.b32.xlu0 %v1627, 96
        %v1811 = vpop.permute.xlu0 %1810
        %1828 = vrot.lane.b32.xlu0 %v1660, 101
        %v1829 = vpop.permute.xlu0 %1828
        %1830 = vrot.lane.b32.xlu0 %v1661, 101
        %v1831 = vpop.permute.xlu0 %1830
        %1832 = vrot.lane.b32.xlu0 %v1662, 101
        %v1833 = vpop.permute.xlu0 %1832
        %1834 = vrot.lane.b32.xlu0 %v1663, 101
        %v1835 = vpop.permute.xlu0 %1834
        %1836 = vrot.lane.b32.xlu0 %v1664, 101
        %v1837 = vpop.permute.xlu0 %1836
        %1838 = vrot.lane.b32.xlu0 %v1665, 101
        %v1839 = vpop.permute.xlu0 %1838
        %1840 = vrot.lane.b32.xlu0 %v1666, 101
        %v1841 = vpop.permute.xlu0 %1840
        %1842 = vrot.lane.b32.xlu0 %v1667, 101
        %v1843 = vpop.permute.xlu0 %1842
        %1860 = vrot.lane.b32.xlu0 %v1700, 106
        %v1861 = vpop.permute.xlu0 %1860
        %1862 = vrot.lane.b32.xlu0 %v1701, 106
        %v1863 = vpop.permute.xlu0 %1862
        %1864 = vrot.lane.b32.xlu0 %v1702, 106
        %v1865 = vpop.permute.xlu0 %1864
        %1866 = vrot.lane.b32.xlu0 %v1703, 106
        %v1867 = vpop.permute.xlu0 %1866
        %1868 = vrot.lane.b32.xlu0 %v1704, 106
        %v1869 = vpop.permute.xlu0 %1868
        %1870 = vrot.lane.b32.xlu0 %v1705, 106
        %v1871 = vpop.permute.xlu0 %1870
        %1872 = vrot.lane.b32.xlu0 %v1706, 106
        %v1873 = vpop.permute.xlu0 %1872
        %1874 = vrot.lane.b32.xlu0 %v1707, 106
        %v1875 = vpop.permute.xlu0 %1874
        %1892 = vrot.lane.b32.xlu0 %v1740, 111
        %v1893 = vpop.permute.xlu0 %1892
        %1894 = vrot.lane.b32.xlu0 %v1741, 111
        %v1895 = vpop.permute.xlu0 %1894
        %1896 = vrot.lane.b32.xlu0 %v1742, 111
        %v1897 = vpop.permute.xlu0 %1896
        %1898 = vrot.lane.b32.xlu0 %v1743, 111
        %v1899 = vpop.permute.xlu0 %1898
        %1900 = vrot.lane.b32.xlu0 %v1744, 111
        %v1901 = vpop.permute.xlu0 %1900
        %1902 = vrot.lane.b32.xlu0 %v1745, 111
        %v1903 = vpop.permute.xlu0 %1902
        %1904 = vrot.lane.b32.xlu0 %v1746, 111
        %v1905 = vpop.permute.xlu0 %1904
        %1906 = vrot.lane.b32.xlu0 %v1747, 111
        %v1907 = vpop.permute.xlu0 %1906
        %1924 = vrot.lane.b32.xlu0 %v1780, 116
        %v1925 = vpop.permute.xlu0 %1924
        %1926 = vrot.lane.b32.xlu0 %v1781, 116
        %v1927 = vpop.permute.xlu0 %1926
        %1928 = vrot.lane.b32.xlu0 %v1782, 116
        %v1929 = vpop.permute.xlu0 %1928
        %1930 = vrot.lane.b32.xlu0 %v1783, 116
        %v1931 = vpop.permute.xlu0 %1930
        %1932 = vrot.lane.b32.xlu0 %v1784, 116
        %v1933 = vpop.permute.xlu0 %1932
        %1934 = vrot.lane.b32.xlu0 %v1785, 116
        %v1935 = vpop.permute.xlu0 %1934
        %1936 = vrot.lane.b32.xlu0 %v1786, 116
        %v1937 = vpop.permute.xlu0 %1936
        %1938 = vrot.lane.b32.xlu0 %v1787, 116
        %v1939 = vpop.permute.xlu0 %1938
        %vm1948 = vcmask 39936
        %v1949 = vsel %vm1948, %v1797, %v1829
        %v1950 = vsel %vm1948, %v1799, %v1831
        %v1951 = vsel %vm1948, %v1801, %v1833
        %v1952 = vsel %vm1948, %v1803, %v1835
        %v1953 = vsel %vm1948, %v1805, %v1837
        %v1954 = vsel %vm1948, %v1807, %v1839
        %v1955 = vsel %vm1948, %v1809, %v1841
        %v1956 = vsel %vm1948, %v1811, %v1843
        %vm1957 = vcmask 80896
        %v1958 = vsel %vm1957, %v1949, %v1861
        %v1959 = vsel %vm1957, %v1950, %v1863
        %v1960 = vsel %vm1957, %v1951, %v1865
        %v1961 = vsel %vm1957, %v1952, %v1867
        %v1962 = vsel %vm1957, %v1953, %v1869
        %v1963 = vsel %vm1957, %v1954, %v1871
        %v1964 = vsel %vm1957, %v1955, %v1873
        %v1965 = vsel %vm1957, %v1956, %v1875
        %vm1966 = vcmask 121856
        %v1967 = vsel %vm1966, %v1958, %v1893
        %v1968 = vsel %vm1966, %v1959, %v1895
        %v1969 = vsel %vm1966, %v1960, %v1897
        %v1970 = vsel %vm1966, %v1961, %v1899
        %v1971 = vsel %vm1966, %v1962, %v1901
        %v1972 = vsel %vm1966, %v1963, %v1903
        %v1973 = vsel %vm1966, %v1964, %v1905
        %v1974 = vsel %vm1966, %v1965, %v1907
        %vm1975 = vcmask 162816
        %v1976 = vsel %vm1975, %v1967, %v1925
        %v1977 = vsel %vm1975, %v1968, %v1927
        %v1978 = vsel %vm1975, %v1969, %v1929
        %v1979 = vsel %vm1975, %v1970, %v1931
        %v1980 = vsel %vm1975, %v1971, %v1933
        %v1981 = vsel %vm1975, %v1972, %v1935
        %v1982 = vsel %vm1975, %v1973, %v1937
        %v1983 = vsel %vm1975, %v1974, %v1939
        %v1984 = vld [vmem:[#allocation11] sm:$0xff]
        %v1985 = vld [vmem:[#allocation11 + $0x8] sm:$0xff]
        %v1986 = vld [vmem:[#allocation11 + $0x10] sm:$0xff]
        %v1987 = vld [vmem:[#allocation11 + $0x18] sm:$0x1]
        %vm1988 = vcmask 203776
        %v1990 = vsel %vm1988, %v1976, 0
        %v1993 = vsel %vm1988, %v1977, 0
        %v1996 = vsel %vm1988, %v1978, 0
        %v1999 = vsel %vm1988, %v1979, 0
        %v2002 = vsel %vm1988, %v1980, 0
        %v2005 = vsel %vm1988, %v1981, 0
        %v2008 = vsel %vm1988, %v1982, 0
        %v2011 = vsel %vm1988, %v1983, 0
        %v2014 = vsel %vm553, %v1987, 0
        %2016 = vmatprep.subr.mxu0 0.0
        %2017 = vmatpush1.msra.mxu0 %v1984
        %2018 = vmatprep.subr.mxu0 0.0
        %2019 = vmatpush1.msra.mxu0 %v1985
        %2020 = vmatprep.subr.mxu0 0.0
        %2021 = vmatpush1.msra.mxu0 %v1986
        %2022 = vmatprep.subr.mxu0 0.0
        %2023 = vmatpush1.msra.mxu0 %v2014
        %2024 = vmatprep.subr.mxu0 0.0
        %2025 = vmatpush1.msra.mxu0 0.0
        %2026 = vmatprep.subr.mxu0 0.0
        %2027 = vmatpush1.msra.mxu0 0.0
        %2028 = vmatprep.subr.mxu0 0.0
        %2029 = vmatpush1.msra.mxu0 0.0
        %2030 = vmatprep.subr.mxu0 0.0
        %2031 = vmatpush1.msra.mxu0 0.0
        %2032 = vmatprep.subr.mxu0 0.0
        %2033 = vmatpush1.msra.mxu0 0.0
        %2034 = vmatprep.subr.mxu0 0.0
        %2035 = vmatpush1.msra.mxu0 0.0
        %2036 = vmatprep.subr.mxu0 0.0
        %2037 = vmatpush1.msra.mxu0 0.0
        %2038 = vmatprep.subr.mxu0 0.0
        %2039 = vmatpush1.msra.mxu0 0.0
        %2040 = vmatprep.subr.mxu0 0.0
        %2041 = vmatpush1.msra.mxu0 0.0
        %2042 = vmatprep.subr.mxu0 0.0
        %2043 = vmatpush1.msra.mxu0 0.0
        %2044 = vmatprep.subr.mxu0 0.0
        %2045 = vmatpush1.msra.mxu0 0.0
        %2046 = vmatprep.subr.mxu0 0.0
        %2047 = vmatpush1.msra.mxu0 0.0
        %2048 = vmatprep.subr.mxu0 0.0
        %2049 = vmatpush1.msra.mxu0 0.0
        %2050 = vmatprep.subr.mxu0 0.0
        %2051 = vmatpush1.msra.mxu0 0.0
        %2052 = vmatprep.subr.mxu0 0.0
        %2053 = vmatpush1.msra.mxu0 0.0
        %2054 = vmatprep.subr.mxu0 0.0
        %2055 = vmatpush1.msra.mxu0 0.0
        %2056 = vmatprep.subr.mxu0 0.0
        %2057 = vmatpush1.msra.mxu0 0.0
        %2058 = vmatprep.subr.mxu0 0.0
        %2059 = vmatpush1.msra.mxu0 0.0
        %2060 = vmatprep.subr.mxu0 0.0
        %2061 = vmatpush1.msra.mxu0 0.0
        %2062 = vmatprep.subr.mxu0 0.0
        %2063 = vmatpush1.msra.mxu0 0.0
        %2064 = vmatprep.subr.mxu0 0.0
        %2065 = vmatpush1.msra.mxu0 0.0
        %2066 = vmatprep.subr.mxu0 0.0
        %2067 = vmatpush1.msra.mxu0 0.0
        %2068 = vmatprep.subr.mxu0 0.0
        %2069 = vmatpush1.msra.mxu0 0.0
        %2070 = vmatprep.subr.mxu0 0.0
        %2071 = vmatpush1.msra.mxu0 0.0
        %2072 = vmatprep.subr.mxu0 0.0
        %2073 = vmatpush1.msra.mxu0 0.0
        %2074 = vmatprep.subr.mxu0 0.0
        %2075 = vmatpush1.msra.mxu0 0.0
        %2076 = vmatprep.subr.mxu0 0.0
        %2077 = vmatpush1.msra.mxu0 0.0
        %2078 = vmatprep.subr.mxu0 0.0
        %2079 = vmatpush1.msra.mxu0 0.0
        %2080 = vmatprep.mubr.f32.mxu0 0.0
        %2081 = vmatmul.mubr.f32.gmra.mrb[0].mxu0 %v1990
        %v2082 = vpop.f32.mrb[0].mxu0
        %v2083 = vadd.f32 0.0, %v2082
        %v2084 = vpop.f32.mrb[0].mxu0
        %2085 = vmatprep.mubr.f32.mxu0 0.0
        %2086 = vmatmul.mubr.f32.gmra.mrb[0].mxu0 %v1993
        %v2087 = vpop.f32.mrb[0].mxu0
        %v2088 = vadd.f32 0.0, %v2087
        %v2089 = vpop.f32.mrb[0].mxu0
        %2090 = vmatprep.mubr.f32.mxu0 0.0
        %2091 = vmatmul.mubr.f32.gmra.mrb[0].mxu0 %v1996
        %v2092 = vpop.f32.mrb[0].mxu0
        %v2093 = vadd.f32 0.0, %v2092
        %v2094 = vpop.f32.mrb[0].mxu0
        %2095 = vmatprep.mubr.f32.mxu0 0.0
        %2096 = vmatmul.mubr.f32.gmra.mrb[0].mxu0 %v1999
        %v2097 = vpop.f32.mrb[0].mxu0
        %v2098 = vadd.f32 0.0, %v2097
        %v2099 = vpop.f32.mrb[0].mxu0
        %2100 = vmatprep.mubr.f32.mxu0 0.0
        %2101 = vmatmul.mubr.f32.gmra.mrb[0].mxu0 %v2002
        %v2102 = vpop.f32.mrb[0].mxu0
        %v2103 = vadd.f32 0.0, %v2102
        %v2104 = vpop.f32.mrb[0].mxu0
        %2105 = vmatprep.mubr.f32.mxu0 0.0
        %2106 = vmatmul.mubr.f32.gmra.mrb[0].mxu0 %v2005
        %v2107 = vpop.f32.mrb[0].mxu0
        %v2108 = vadd.f32 0.0, %v2107
        %v2109 = vpop.f32.mrb[0].mxu0
        %2110 = vmatprep.mubr.f32.mxu0 0.0
        %2111 = vmatmul.mubr.f32.gmra.mrb[0].mxu0 %v2008
        %v2112 = vpop.f32.mrb[0].mxu0
        %v2113 = vadd.f32 0.0, %v2112
        %v2114 = vpop.f32.mrb[0].mxu0
        %2115 = vmatprep.mubr.f32.mxu0 0.0
        %2116 = vmatmul.mubr.f32.gmra.mrb[0].mxu0 %v2011
        %v2117 = vpop.f32.mrb[0].mxu0
        %v2118 = vadd.f32 0.0, %v2117
        %v2119 = vpop.f32.mrb[0].mxu0
        %2120 = vdwg.mxu0
        %2129 = vrot.lane.b32.xlu0 %v1542, 32
        %v2130 = vpop.permute.xlu0 %2129
        %2131 = vrot.lane.b32.xlu0 %v1547, 32
        %v2132 = vpop.permute.xlu0 %2131
        %2133 = vrot.lane.b32.xlu0 %v1552, 32
        %v2134 = vpop.permute.xlu0 %2133
        %2135 = vrot.lane.b32.xlu0 %v1557, 32
        %v2136 = vpop.permute.xlu0 %2135
        %2137 = vrot.lane.b32.xlu0 %v1562, 32
        %v2138 = vpop.permute.xlu0 %2137
        %2139 = vrot.lane.b32.xlu0 %v1567, 32
        %v2140 = vpop.permute.xlu0 %2139
        %2141 = vrot.lane.b32.xlu0 %v1572, 32
        %v2142 = vpop.permute.xlu0 %2141
        %2143 = vrot.lane.b32.xlu0 %v1577, 32
        %v2144 = vpop.permute.xlu0 %2143
        %v2153 = vadd.f32 %v477, %v2130
        %v2154 = vadd.f32 %v482, %v2132
        %v2155 = vadd.f32 %v487, %v2134
        %v2156 = vadd.f32 %v492, %v2136
        %v2157 = vadd.f32 %v497, %v2138
        %v2158 = vadd.f32 %v502, %v2140
        %v2159 = vadd.f32 %v507, %v2142
        %v2160 = vadd.f32 %v512, %v2144
        %2169 = vrot.lane.b32.xlu0 %v2083, 32
        %v2170 = vpop.permute.xlu0 %2169
        %2171 = vrot.lane.b32.xlu0 %v2088, 32
        %v2172 = vpop.permute.xlu0 %2171
        %2173 = vrot.lane.b32.xlu0 %v2093, 32
        %v2174 = vpop.permute.xlu0 %2173
        %2175 = vrot.lane.b32.xlu0 %v2098, 32
        %v2176 = vpop.permute.xlu0 %2175
        %2177 = vrot.lane.b32.xlu0 %v2103, 32
        %v2178 = vpop.permute.xlu0 %2177
        %2179 = vrot.lane.b32.xlu0 %v2108, 32
        %v2180 = vpop.permute.xlu0 %2179
        %2181 = vrot.lane.b32.xlu0 %v2113, 32
        %v2182 = vpop.permute.xlu0 %2181
        %2183 = vrot.lane.b32.xlu0 %v2118, 32
        %v2184 = vpop.permute.xlu0 %2183
        %v2193 = vadd.f32 %v2153, %v2170
        %v2194 = vadd.f32 %v2154, %v2172
        %v2195 = vadd.f32 %v2155, %v2174
        %v2196 = vadd.f32 %v2156, %v2176
        %v2197 = vadd.f32 %v2157, %v2178
        %v2198 = vadd.f32 %v2158, %v2180
        %v2199 = vadd.f32 %v2159, %v2182
        %v2200 = vadd.f32 %v2160, %v2184
        %2209 = vrot.lane.b32.xlu0 %v2193, 96
        %v2210 = vpop.permute.xlu0 %2209
        %2211 = vrot.lane.b32.xlu0 %v2194, 96
        %v2212 = vpop.permute.xlu0 %2211
        %2213 = vrot.lane.b32.xlu0 %v2195, 96
        %v2214 = vpop.permute.xlu0 %2213
        %2215 = vrot.lane.b32.xlu0 %v2196, 96
        %v2216 = vpop.permute.xlu0 %2215
        %2217 = vrot.lane.b32.xlu0 %v2197, 96
        %v2218 = vpop.permute.xlu0 %2217
        %2219 = vrot.lane.b32.xlu0 %v2198, 96
        %v2220 = vpop.permute.xlu0 %2219
        %2221 = vrot.lane.b32.xlu0 %v2199, 96
        %v2222 = vpop.permute.xlu0 %2221
        %2223 = vrot.lane.b32.xlu0 %v2200, 96
        %v2224 = vpop.permute.xlu0 %2223
        %2233 = vst.msk [vmem:[%s369] sm:$0xff] %vm385, %v2210
        %2234 = vst.msk [vmem:[%s369 + $0x8] sm:$0xff] %vm385, %v2212
        %2235 = vst.msk [vmem:[%s369 + $0x10] sm:$0xff] %vm385, %v2214
        %2236 = vst.msk [vmem:[%s369 + $0x18] sm:$0xff] %vm385, %v2216
        %2237 = vst.msk [vmem:[%s369 + $0x20] sm:$0xff] %vm385, %v2218
        %2238 = vst.msk [vmem:[%s369 + $0x28] sm:$0xff] %vm385, %v2220
        %2239 = vst.msk [vmem:[%s369 + $0x30] sm:$0xff] %vm385, %v2222
        %2240 = vst.msk [vmem:[%s369 + $0x38] sm:$0xff] %vm385, %v2224
        %s2241 = sand.u32 %s172, 1
        %s2242 = scalar_lea.sflag [#allocation4], %s2241
        %s2243 = sand.u32 %s172, 1
        %s2244 = smul.addr %s2243, 64
        %s2245 = scalar_lea.vmem [#allocation13], %s2244
        // Predicated region
        $region69: #{tpu_custom_call.1} parent=43 // pred_check
          %p2246 = pneg %p182
        $region70: #{tpu_custom_call.1} parent=43 // pred_check_branch
          %2248 = sbr.rel (%p2246) target = $region72
        $region71: #{tpu_custom_call.1} parent=43 // pred_region
          %s2249 = smul.u32 4, %s28
          %s2251 = ssub.s32 1024, 1024
          %2252 = vsyncadd %s2242, %s2251
          %s2253 = smul.addr %s2249, 2
          %s2254 = smul.addr %s2253, 128
          %s2255 = scalar_lea.hbm %s6, %s2254
          %s2256 = sshll.u32 %s2245, 4
          %s2257 = int_to_ptr.vmem [resolvable:$true] %s2256
          %2262 = dma.vmem_to_hbm [thread:$0]  %s2257, 1024, %s2255, %s2242, 128, 128, 8
        $region72: #{tpu_custom_call.1} parent=43 // pred_fallthru
          _
      $region44: #{tpu_custom_call.1} parent=5 // pred_fallthru
        _
      %p2263 = scmp.le.s32.totalorder 2, %s23
      // Predicated region
      $region73: #{tpu_custom_call.1} parent=5 // pred_check
        %p2264 = pneg %p2263
      $region74: #{tpu_custom_call.1} parent=5 // pred_check_branch
        %2266 = sbr.rel (%p2264) target = $region76
      $region75: #{tpu_custom_call.1} parent=5 // pred_region
        %s2267 = ssub.s32 %s23, 2
        // Predicated region
        $region77: #{tpu_custom_call.1} parent=75 // pred_check
          %p2268 = pneg %p188
        $region78: #{tpu_custom_call.1} parent=75 // pred_check_branch
          %2270 = sbr.rel (%p2268) target = $region80
        $region79: #{tpu_custom_call.1} parent=75 // pred_region
          %s2271 = sand.u32 %s173, 1
          %s2272 = scalar_lea.sflag [#allocation4], %s2271
          %s2273 = sand.u32 %s173, 1
          %s2274 = smul.addr %s2273, 64
          %s2275 = scalar_lea.vmem [#allocation13], %s2274
          %2276 = dma.done %s2272, 1024
        $region80: #{tpu_custom_call.1} parent=75 // pred_fallthru
          _
      $region76: #{tpu_custom_call.1} parent=5 // pred_fallthru
        _
    $region6: #{tpu_custom_call.1} parent=1 // loop_footer
      %s27 = sadd.s32 1, %s23
    $region7: #{tpu_custom_call.1} parent=1 // loop_footer_branch
      %22 = sbr.rel target = $region3
    $region8: #{tpu_custom_call.1} parent=1 // loop_exit
      _
    %2277 = vsyncpa [#allocation3], 1
    %s2278 = scalar_lea.sflag [#allocation3], 1
    %2279 = vsyncpa %s2278, 1
    %2280 = vsyncpa [#allocation6], 1
    %s2281 = scalar_lea.sflag [#allocation6], 1
    %2282 = vsyncpa %s2281, 1
    %2283 = vsyncpa [#allocation9], 1
    %2284 = vsyncpa [#allocation12], 1
    %2285 = vsyncpa [#allocation4], 1
    %s2286 = scalar_lea.sflag [#allocation4], 1
    %2287 = vsyncpa %s2286, 1

</llo_original>
